<compile_context>
chip_gen: v7x
topology: tpu7x:2x2x1
jax: 0.10.0
libtpu: 0.0.40
codegen_flags: <defaults>
</compile_context>

<pallas_src>
import functools

import jax
import jax.numpy as jnp
from jax.experimental import pallas as pl
from jax.experimental.pallas import tpu as pltpu

NEG_SLOPE = 0.01          # nn.LeakyReLU() default negative_slope
IN_FEATURES = 1024        # densenet121.classifier.in_features
HIDDEN = 512              # nn.Linear(n_features, 512)
OUT_FEATURES = 1          # nn.Linear(512, 1)


def _vmem_budgets():
    """(vmem_limit_bytes, double-buffered feature-map stream budget) per generation."""
    vmem_bytes = 64 * 1024 * 1024                       # conservative (v7x per-TC)
    try:
        info = pltpu.get_tpu_info()
        vmem_bytes = int(getattr(info, "vmem_capacity_bytes", vmem_bytes))
    except Exception:
        pass
    if vmem_bytes >= 128 * 1024 * 1024:                 # v5e / v6e: 128 MiB VMEM
        return 96 * 1024 * 1024, 56 * 1024 * 1024
    return 48 * 1024 * 1024, 24 * 1024 * 1024           # v7x: 64 MiB per TensorCore


def _finalize_head(pooled_f32, w1_ref, b1_ref, w2r_ref, b2_ref, o_ref):
    """pooled_f32: (bB, C) global-avg-pooled features -> (bB, 1) logits."""
    # Linear(1024, 512): bf16 MXU matmul, f32 accumulation; bias add in f32.
    h = jnp.dot(pooled_f32.astype(jnp.bfloat16), w1_ref[...],
                preferred_element_type=jnp.float32) + b1_ref[...]
    # LeakyReLU(0.01)
    h = jnp.where(h > 0, h, NEG_SLOPE * h)
    # Dropout(p=0.5): identity at inference time.
    # Linear(512, 1) lane-dense: VPU multiply + lane reduce against (1, 512) row.
    out = jnp.sum(h * w2r_ref[...], axis=-1, keepdims=True) + b2_ref[0]
    o_ref[...] = out.astype(o_ref.dtype)


def _head_single_kernel(x_ref, w1_ref, b1_ref, w2r_ref, b2_ref, o_ref, *, inv_hw):
    """hw_tiles == 1 specialization: whole spatial extent in one block, no scratch."""
    # ReLU in streamed dtype (exact), spatial sum in f32, then mean.
    pooled = jnp.sum(jnp.maximum(x_ref[...], 0).astype(jnp.float32), axis=1) * inv_hw
    _finalize_head(pooled, w1_ref, b1_ref, w2r_ref, b2_ref, o_ref)


def _head_accum_kernel(x_ref, w1_ref, b1_ref, w2r_ref, b2_ref, o_ref, acc_ref, *, inv_hw):
    """Grid = (batch_tiles, hw_tiles); hw is the trailing 'arbitrary' reduction axis."""
    hw_i = pl.program_id(1)

    @pl.when(hw_i == 0)
    def _init():
        acc_ref[...] = jnp.zeros_like(acc_ref)

    # ReLU + partial spatial sum for this HW tile, accumulated in f32.
    acc_ref[...] += jnp.sum(jnp.maximum(x_ref[...], 0).astype(jnp.float32), axis=1)

    @pl.when(hw_i == pl.num_programs(1) - 1)
    def _finalize():
        _finalize_head(acc_ref[...] * inv_hw, w1_ref, b1_ref, w2r_ref, b2_ref, o_ref)


def _choose_hw_tile(hw, x_itemsize):
    # Sublane-aligned tile dividing HW (bf16 needs multiples of 16); else full HW
    # (e.g. 49 for DenseNet121's 7x7 map) -> single-pass kernel, no HBM padding.
    min_sub = 8 if x_itemsize >= 4 else (16 if x_itemsize == 2 else 32)
    for t in (128, 64, 32, 16, 8):
        if t >= min_sub and t < hw and hw % t == 0:
            return t
    return hw


def _choose_batch_tile(B, hw_tile, C, x_itemsize, stream_budget):
    b_cap = 8 * pl.cdiv(B, 8)                     # no larger than (rounded-up) batch
    bB = min(256, b_cap)
    bB = max(8, 8 * (bB // 8))
    # Fit double-buffered feature-map blocks into the per-generation stream budget.
    while bB > 8 and 2 * bB * hw_tile * C * x_itemsize > stream_budget:
        bB -= 8
    # v7x megacore: keep >= 2 steps on the 'parallel' batch axis whenever possible.
    while B >= 16 and bB > 8 and pl.cdiv(B, bB) < 2:
        bB = max(8, 8 * ((bB // 2 + 7) // 8))
    return bB


def densenet_classifier_head(feat_nhwc, w1, b1, w2, b2):
    """feat_nhwc: [B, H, W, C] feature map from the frozen densenet backbone,
    streamed in its native dtype (f32 or bf16) -- no extra HBM cast/pad pass.

    w1: [C, 512], b1: [512], w2: [512, 1], b2: [1]  (x @ w == PyTorch x @ weight.T)
    Returns [B, 1] float32 logits.
    """
    B, H, W, C = feat_nhwc.shape
    assert C == w1.shape[0]
    hw = H * W
    x = feat_nhwc.reshape(B, hw, C)               # free: C already on the lane axis

    vmem_limit, stream_budget = _vmem_budgets()
    hw_tile = _choose_hw_tile(hw, x.dtype.itemsize)
    bB = _choose_batch_tile(B, hw_tile, C, x.dtype.itemsize, stream_budget)
    num_b_tiles = pl.cdiv(B, bB)                  # partial last block (no jnp.pad)
    hw_tiles = hw // hw_tile

    w1_bf16 = w1.astype(jnp.bfloat16)                     # halves weight VMEM/HBM
    b1_2d = b1.reshape(1, HIDDEN).astype(jnp.float32)
    w2_row = w2.reshape(1, HIDDEN).astype(jnp.float32)    # (512,1) -> (1,512) row
    b2_s = b2.reshape(OUT_FEATURES).astype(jnp.float32)   # scalar -> SMEM

    inv_hw = 1.0 / float(hw)
    cost = pl.CostEstimate(
        flops=2 * B * C * HIDDEN + 2 * B * hw * C,
        transcendentals=0,
        bytes_accessed=B * hw * C * x.dtype.itemsize
        + C * HIDDEN * 2 + B * OUT_FEATURES * 4,
    )

    if hw_tiles == 1:
        kernel = functools.partial(_head_single_kernel, inv_hw=inv_hw)
        grid_spec = pltpu.PrefetchScalarGridSpec(
            num_scalar_prefetch=0,
            grid=(num_b_tiles,),
            in_specs=[
                # feature-map stream: pipelined across batch tiles only
                pl.BlockSpec((bB, hw, C), lambda b: (b, 0, 0)),
                # weights / biases: constant index maps -> VMEM-resident
                pl.BlockSpec((C, HIDDEN), lambda b: (0, 0)),
                pl.BlockSpec((1, HIDDEN), lambda b: (0, 0)),
                pl.BlockSpec((1, HIDDEN), lambda b: (0, 0)),
                pl.BlockSpec(memory_space=pltpu.MemorySpace.SMEM),
            ],
            out_specs=pl.BlockSpec((bB, OUT_FEATURES), lambda b: (b, 0)),
        )
        dims = ("parallel",)
    else:
        kernel = functools.partial(_head_accum_kernel, inv_hw=inv_hw)
        grid_spec = pltpu.PrefetchScalarGridSpec(
            num_scalar_prefetch=0,
            grid=(num_b_tiles, hw_tiles),
            in_specs=[
                # feature-map stream: pipelined over (batch, hw)
                pl.BlockSpec((bB, hw_tile, C), lambda b, h: (b, h, 0)),
                pl.BlockSpec((C, HIDDEN), lambda b, h: (0, 0)),
                pl.BlockSpec((1, HIDDEN), lambda b, h: (0, 0)),
                pl.BlockSpec((1, HIDDEN), lambda b, h: (0, 0)),
                pl.BlockSpec(memory_space=pltpu.MemorySpace.SMEM),
            ],
            out_specs=pl.BlockSpec((bB, OUT_FEATURES), lambda b, h: (b, 0)),
            scratch_shapes=[pltpu.VMEM((bB, C), jnp.float32)],
        )
        dims = ("parallel", "arbitrary")

    out = pl.pallas_call(
        kernel,
        out_shape=jax.ShapeDtypeStruct((B, OUT_FEATURES), jnp.float32),
        grid_spec=grid_spec,
        compiler_params=pltpu.CompilerParams(
            dimension_semantics=dims,
            vmem_limit_bytes=vmem_limit,
        ),
        cost_estimate=cost,
    )(x, w1_bf16, b1_2d, w2_row, b2_s)

    return out


def _ref_forward(feat_nhwc, w1, b1, w2, b2):
    pooled = jnp.mean(jnp.maximum(feat_nhwc.astype(jnp.float32), 0.0), axis=(1, 2))
    h = pooled @ w1 + b1
    h = jnp.where(h > 0, h, NEG_SLOPE * h)
    return h @ w2 + b2


if __name__ == "__main__":
    key = jax.random.PRNGKey(0)
    k_x1, k_x2, k_w1, k_b1, k_w2, k_b2 = jax.random.split(key, 6)

    # Parameters stored as [in, out]; equivalent to PyTorch's x @ weight.T.
    w1 = jax.random.normal(k_w1, (IN_FEATURES, HIDDEN), dtype=jnp.float32) * 0.02
    b1 = jax.random.normal(k_b1, (HIDDEN,), dtype=jnp.float32) * 0.01
    w2 = jax.random.normal(k_w2, (HIDDEN, OUT_FEATURES), dtype=jnp.float32) * 0.02
    b2 = jax.random.normal(k_b2, (OUT_FEATURES,), dtype=jnp.float32) * 0.01

    # Case 1: B=2, 4x4 spatial -> single-pass kernel + partial batch block (2 < 8).
    # Feature map streamed in bf16 (as emitted by the frozen backbone).
    feat_a = jax.random.normal(
        k_x1, (2, 4, 4, IN_FEATURES), dtype=jnp.float32).astype(jnp.bfloat16)
    out_a = jax.block_until_ready(densenet_classifier_head(feat_a, w1, b1, w2, b2))
    ref_a = _ref_forward(feat_a, w1, b1, w2, b2)
    assert out_a.shape == (2, OUT_FEATURES)
    assert jnp.allclose(out_a, ref_a, atol=2e-2, rtol=2e-2), (out_a, ref_a)

    # Case 2: B=18, 8x8 spatial -> multi-tile HW reduction, >=2 'parallel' batch
    # grid steps, and a partial last batch block (no host-side padding).
    feat_b = jax.random.normal(
        k_x2, (18, 8, 8, IN_FEATURES), dtype=jnp.float32).astype(jnp.bfloat16)
    out_b = jax.block_until_ready(densenet_classifier_head(feat_b, w1, b1, w2, b2))
    ref_b = _ref_forward(feat_b, w1, b1, w2, b2)
    assert out_b.shape == (18, OUT_FEATURES)
    assert jnp.allclose(out_b, ref_b, atol=2e-2, rtol=2e-2), (out_b, ref_b)

    print("KERNEL_OK")
</pallas_src>

<mosaic_0001>
module attributes {stable_mosaic.version = 11 : i64} {
  func.func @_head_single_kernel(%arg0: i32, %arg1: memref<8x16x1024xbf16, #tpu.memory_space<vmem>>, %arg2: memref<1024x512xbf16, #tpu.memory_space<vmem>>, %arg3: memref<1x512xf32, #tpu.memory_space<vmem>>, %arg4: memref<1x512xf32, #tpu.memory_space<vmem>>, %arg5: memref<1xf32, #tpu.memory_space<smem>>, %arg6: memref<8x1xf32, #tpu.memory_space<vmem>>) attributes {dimension_semantics = [#tpu.dimension_semantics<parallel>], iteration_bounds = array<i64: 1>, scalar_prefetch = 0 : i64, scratch_operands = 0 : i64, tpu.core_type = #tpu.core_type<tc>, window_params = [{transform_indices = @transform_0, window_bounds = array<i64: 8, 16, 1024>}, {pipeline_mode = #tpu.pipeline_mode<synchronous>, transform_indices = @transform_1, window_bounds = array<i64: 1024, 512>}, {pipeline_mode = #tpu.pipeline_mode<synchronous>, transform_indices = @transform_2, window_bounds = array<i64: 1, 512>}, {pipeline_mode = #tpu.pipeline_mode<synchronous>, transform_indices = @transform_3, window_bounds = array<i64: 1, 512>}, {transform_indices = @transform_4, window_bounds = array<i64: 1>}, {transform_indices = @transform_5, window_bounds = array<i64: 8, 1>}]} {
    %c0 = arith.constant 0 : index
    %c0_0 = arith.constant 0 : index
    %c0_1 = arith.constant 0 : index
    %0 = vector.load %arg1[%c0, %c0_0, %c0_1] : memref<8x16x1024xbf16, #tpu.memory_space<vmem>>, vector<8x16x1024xbf16>
    %cst = arith.constant 0.000000e+00 : bf16
    %1 = vector.broadcast %cst : bf16 to vector<8x16x1024xbf16>
    %2 = arith.maximumf %0, %1 : vector<8x16x1024xbf16>
    %3 = arith.extf %2 : vector<8x16x1024xbf16> to vector<8x16x1024xf32>
    %cst_2 = arith.constant dense<0.000000e+00> : vector<8x1024xf32>
    %4 = vector.multi_reduction <add>, %3, %cst_2 [1] : vector<8x16x1024xf32> to vector<8x1024xf32>
    %cst_3 = arith.constant 6.250000e-02 : f32
    %5 = vector.broadcast %cst_3 : f32 to vector<8x1024xf32>
    %6 = arith.mulf %4, %5 : vector<8x1024xf32>
    %7 = arith.truncf %6 : vector<8x1024xf32> to vector<8x1024xbf16>
    %c0_4 = arith.constant 0 : index
    %c0_5 = arith.constant 0 : index
    %8 = vector.load %arg2[%c0_4, %c0_5] : memref<1024x512xbf16, #tpu.memory_space<vmem>>, vector<1024x512xbf16>
    %cst_6 = arith.constant dense<0.000000e+00> : vector<8x512xf32>
    %9 = tpu.matmul %7, %8, %cst_6 {dimension_numbers = #tpu.dot_dimension_numbers<[1], [0], [0], [1], [0, 0, 1, 1], [], []>} : vector<8x1024xbf16>, vector<1024x512xbf16>, vector<8x512xf32> -> vector<8x512xf32>
    %c0_7 = arith.constant 0 : index
    %c0_8 = arith.constant 0 : index
    %10 = vector.load %arg3[%c0_7, %c0_8] : memref<1x512xf32, #tpu.memory_space<vmem>>, vector<1x512xf32>
    %11 = vector.broadcast %10 : vector<1x512xf32> to vector<8x512xf32>
    %12 = arith.addf %9, %11 : vector<8x512xf32>
    %cst_9 = arith.constant 0.000000e+00 : f32
    %13 = vector.broadcast %cst_9 : f32 to vector<8x512xf32>
    %14 = arith.cmpf ogt, %12, %13 : vector<8x512xf32>
    %cst_10 = arith.constant 0.00999999977 : f32
    %15 = vector.broadcast %cst_10 : f32 to vector<8x512xf32>
    %16 = arith.mulf %15, %12 : vector<8x512xf32>
    %17 = arith.select %14, %12, %16 : vector<8x512xi1>, vector<8x512xf32>
    %c0_11 = arith.constant 0 : index
    %c0_12 = arith.constant 0 : index
    %18 = vector.load %arg4[%c0_11, %c0_12] : memref<1x512xf32, #tpu.memory_space<vmem>>, vector<1x512xf32>
    %19 = vector.broadcast %18 : vector<1x512xf32> to vector<8x512xf32>
    %20 = arith.mulf %17, %19 : vector<8x512xf32>
    %cst_13 = arith.constant dense<0.000000e+00> : vector<8xf32>
    %21 = vector.multi_reduction <add>, %20, %cst_13 [1] : vector<8x512xf32> to vector<8xf32>
    %22 = vector.shape_cast %21 : vector<8xf32> to vector<8x1xf32>
    %c0_14 = arith.constant 0 : index
    %23 = memref.load %arg5[%c0_14] : memref<1xf32, #tpu.memory_space<smem>>
    %24 = vector.broadcast %23 : f32 to vector<8x1xf32>
    %25 = arith.addf %22, %24 : vector<8x1xf32>
    %c0_15 = arith.constant 0 : index
    %c0_16 = arith.constant 0 : index
    %26 = vector.load %arg6[%c0_15, %c0_16] : memref<8x1xf32, #tpu.memory_space<vmem>>, vector<8x1xf32>
    tpu.vector_store %arg6[%c0_15, %c0_16], %25 {strides = array<i32>} : memref<8x1xf32, #tpu.memory_space<vmem>>, vector<8x1xf32>,
    return
  }
  func.func @transform_0(%arg0: i32) -> (i32, i32, i32) {
    %c0_i32 = arith.constant 0 : i32
    %c0_i32_0 = arith.constant 0 : i32
    %c0_i32_1 = arith.constant 0 : i32
    return %arg0, %c0_i32, %c0_i32_0 : i32, i32, i32
  }
  func.func @transform_1(%arg0: i32) -> (i32, i32) {
    %c0_i32 = arith.constant 0 : i32
    %c0_i32_0 = arith.constant 0 : i32
    %c0_i32_1 = arith.constant 0 : i32
    return %c0_i32, %c0_i32_0 : i32, i32
  }
  func.func @transform_2(%arg0: i32) -> (i32, i32) {
    %c0_i32 = arith.constant 0 : i32
    %c0_i32_0 = arith.constant 0 : i32
    %c0_i32_1 = arith.constant 0 : i32
    return %c0_i32, %c0_i32_0 : i32, i32
  }
  func.func @transform_3(%arg0: i32) -> (i32, i32) {
    %c0_i32 = arith.constant 0 : i32
    %c0_i32_0 = arith.constant 0 : i32
    %c0_i32_1 = arith.constant 0 : i32
    return %c0_i32, %c0_i32_0 : i32, i32
  }
  func.func @transform_4(%arg0: i32) -> i32 {
    %c0_i32 = arith.constant 0 : i32
    %c0_i32_0 = arith.constant 0 : i32
    return %c0_i32 : i32
  }
  func.func @transform_5(%arg0: i32) -> (i32, i32) {
    %c0_i32 = arith.constant 0 : i32
    %c0_i32_0 = arith.constant 0 : i32
    return %arg0, %c0_i32 : i32, i32
  }
}

</mosaic_0001>

<llo_original>
// kernel: tpu_custom_call.1
$region0: #{tpu_custom_call.1}
  #allocation0 [shape = 'u32[]', space=smem, size = 0x4, offset = 0x4, fixed_abs, tag = 'smem constant byte address 0x4 - core index']
  #allocation1 [shape = 'u32[144,128]{1,0:T(1,128)}', space=vmem, size = 0x12000, scoped, tag = 'internal scratch']
  #allocation2 [shape = 'f32[1]{0:T(128)S(6)}', space=smem, size = 0x200, scoped, tag = 'scoped memory for tpu_custom_call.1']
  %s0 = inlined_call_operand.hbm [shape: bf16[2,16,1024], index: 0, kind: input, shape index: {}]
  %s1 = inlined_call_operand.hbm [shape: bf16[1024,512], index: 1, kind: input, shape index: {}]
  %s2 = inlined_call_operand.vmem [shape: f32[1,512], index: 2, kind: input, shape index: {}]
  %s3 = inlined_call_operand.vmem [shape: f32[1,512], index: 3, kind: input, shape index: {}]
  %s4 = inlined_call_operand.<no memory space> [shape: f32[1], index: 4, kind: input, shape index: {}]
  %s5 = inlined_call_operand.vmem [shape: f32[2,1], index: 5, kind: output, shape index: {}]
  %s6 = sld [smem:[#allocation0]]
  $region68: #{tpu_custom_call.1} parent=0
    _
  %s8 = ssub.s32 1, %s6
  %s9 = scalar_select 0, %s8, %s6
  %10 = sst [smem:[#allocation2]] %s4
  $region1: #{tpu_custom_call.1} parent=0
    #allocation3 [shape = 'u8[262144]{0}', space=vmem, size = 0x40000, scoped, tag = 'input window, operand 0, single buffered']
    #allocation4 [shape = 's32[1]{0}', space=sflag, size = 0x4, scoped, tag = 'scoped memory for tpu_custom_call.1']
    #allocation5 [shape = 'u8[1048576]{0}', space=vmem, size = 0x100000, scoped, tag = 'input window, operand 1, single buffered']
    #allocation6 [shape = 's32[1]{0}', space=sflag, size = 0x4, scoped, tag = 'scoped memory for tpu_custom_call.1']
    #allocation7 [shape = 'u8[4096]{0}', space=vmem, size = 0x1000, scoped, tag = 'output window, operand 0, single buffered']
    %11 = vsyncpa [#allocation4], 0
    %12 = vsyncpa [#allocation6], 0
    // Predicated region
    $region2: #{tpu_custom_call.1} parent=1 // pred_check
      _
    $region3: #{tpu_custom_call.1} parent=1 // pred_check_branch
      %14 = sbr.rel (0) target = $region5
    $region4: #{tpu_custom_call.1} parent=1 // pred_region
      %s16 = ssub.s32 8192, 2048
      %17 = vsyncadd [#allocation4], %s16
      %s18 = sshll.u32 [#allocation3], 4
      %s19 = int_to_ptr.vmem [resolvable:$true] %s18
      %24 = dma.hbm_to_vmem [thread:$0]  %s0, 2048, %s19, [#allocation4], 512, 512, 32
    $region5: #{tpu_custom_call.1} parent=1 // pred_fallthru
      _
    // Predicated region
    $region6: #{tpu_custom_call.1} parent=1 // pred_check
      _
    $region7: #{tpu_custom_call.1} parent=1 // pred_check_branch
      %26 = sbr.rel (0) target = $region9
    $region8: #{tpu_custom_call.1} parent=1 // pred_region
      %s28 = ssub.s32 32768, 32768
      %29 = vsyncadd [#allocation6], %s28
      %s30 = sshll.u32 [#allocation5], 4
      %s31 = int_to_ptr.vmem [resolvable:$true] %s30
      %36 = dma.hbm_to_vmem [thread:$0]  %s1, 32768, %s31, [#allocation6], 256, 256, 16
    $region9: #{tpu_custom_call.1} parent=1 // pred_fallthru
      _
    // Predicated region
    $region10: #{tpu_custom_call.1} parent=1 // pred_check
      _
    $region11: #{tpu_custom_call.1} parent=1 // pred_check_branch
      %38 = sbr.rel (0) target = $region13
    $region12: #{tpu_custom_call.1} parent=1 // pred_region
      _
    $region13: #{tpu_custom_call.1} parent=1 // pred_fallthru
      _
    // Predicated region
    $region14: #{tpu_custom_call.1} parent=1 // pred_check
      _
    $region15: #{tpu_custom_call.1} parent=1 // pred_check_branch
      %40 = sbr.rel (0) target = $region17
    $region16: #{tpu_custom_call.1} parent=1 // pred_region
      _
    $region17: #{tpu_custom_call.1} parent=1 // pred_fallthru
      _
    // Predicated region
    $region18: #{tpu_custom_call.1} parent=1 // pred_check
      _
    $region19: #{tpu_custom_call.1} parent=1 // pred_check_branch
      %42 = sbr.rel (0) target = $region21
    $region20: #{tpu_custom_call.1} parent=1 // pred_region
      _
    $region21: #{tpu_custom_call.1} parent=1 // pred_fallthru
      _
    // Predicated region
    $region22: #{tpu_custom_call.1} parent=1 // pred_check
      _
    $region23: #{tpu_custom_call.1} parent=1 // pred_check_branch
      %44 = sbr.rel (0) target = $region25
    $region24: #{tpu_custom_call.1} parent=1 // pred_region
      %45 = dma.done [#allocation4], 8192
    $region25: #{tpu_custom_call.1} parent=1 // pred_fallthru
      _
    // Predicated region
    $region26: #{tpu_custom_call.1} parent=1 // pred_check
      _
    $region27: #{tpu_custom_call.1} parent=1 // pred_check_branch
      %47 = sbr.rel (0) target = $region29
    $region28: #{tpu_custom_call.1} parent=1 // pred_region
      %48 = dma.done [#allocation6], 32768
    $region29: #{tpu_custom_call.1} parent=1 // pred_fallthru
      _
    %v50 = vld [vmem:[#allocation3] sm:$0xff]
    %v51 = vld [vmem:[#allocation3 + $0x8] sm:$0xff]
    %v52 = vld [vmem:[#allocation3 + $0x10] sm:$0xff]
    %v53 = vld [vmem:[#allocation3 + $0x18] sm:$0xff]
    %v54 = vld [vmem:[#allocation3 + $0x20] sm:$0xff]
    %v55 = vld [vmem:[#allocation3 + $0x28] sm:$0xff]
    %v56 = vld [vmem:[#allocation3 + $0x30] sm:$0xff]
    %v57 = vld [vmem:[#allocation3 + $0x38] sm:$0xff]
    %v58 = vld [vmem:[#allocation3 + $0x40] sm:$0xff]
    %v59 = vld [vmem:[#allocation3 + $0x48] sm:$0xff]
    %v60 = vld [vmem:[#allocation3 + $0x50] sm:$0xff]
    %v61 = vld [vmem:[#allocation3 + $0x58] sm:$0xff]
    %v62 = vld [vmem:[#allocation3 + $0x60] sm:$0xff]
    %v63 = vld [vmem:[#allocation3 + $0x68] sm:$0xff]
    %v64 = vld [vmem:[#allocation3 + $0x70] sm:$0xff]
    %v65 = vld [vmem:[#allocation3 + $0x78] sm:$0xff]
    %v66 = vld [vmem:[#allocation3 + $0x80] sm:$0xff]
    %v67 = vld [vmem:[#allocation3 + $0x88] sm:$0xff]
    %v68 = vld [vmem:[#allocation3 + $0x90] sm:$0xff]
    %v69 = vld [vmem:[#allocation3 + $0x98] sm:$0xff]
    %v70 = vld [vmem:[#allocation3 + $0xa0] sm:$0xff]
    %v71 = vld [vmem:[#allocation3 + $0xa8] sm:$0xff]
    %v72 = vld [vmem:[#allocation3 + $0xb0] sm:$0xff]
    %v73 = vld [vmem:[#allocation3 + $0xb8] sm:$0xff]
    %v74 = vld [vmem:[#allocation3 + $0xc0] sm:$0xff]
    %v75 = vld [vmem:[#allocation3 + $0xc8] sm:$0xff]
    %v76 = vld [vmem:[#allocation3 + $0xd0] sm:$0xff]
    %v77 = vld [vmem:[#allocation3 + $0xd8] sm:$0xff]
    %v78 = vld [vmem:[#allocation3 + $0xe0] sm:$0xff]
    %v79 = vld [vmem:[#allocation3 + $0xe8] sm:$0xff]
    %v80 = vld [vmem:[#allocation3 + $0xf0] sm:$0xff]
    %v81 = vld [vmem:[#allocation3 + $0xf8] sm:$0xff]
    %v82 = vld [vmem:[#allocation3 + $0x100] sm:$0xff]
    %v83 = vld [vmem:[#allocation3 + $0x108] sm:$0xff]
    %v84 = vld [vmem:[#allocation3 + $0x110] sm:$0xff]
    %v85 = vld [vmem:[#allocation3 + $0x118] sm:$0xff]
    %v86 = vld [vmem:[#allocation3 + $0x120] sm:$0xff]
    %v87 = vld [vmem:[#allocation3 + $0x128] sm:$0xff]
    %v88 = vld [vmem:[#allocation3 + $0x130] sm:$0xff]
    %v89 = vld [vmem:[#allocation3 + $0x138] sm:$0xff]
    %v90 = vld [vmem:[#allocation3 + $0x140] sm:$0xff]
    %v91 = vld [vmem:[#allocation3 + $0x148] sm:$0xff]
    %v92 = vld [vmem:[#allocation3 + $0x150] sm:$0xff]
    %v93 = vld [vmem:[#allocation3 + $0x158] sm:$0xff]
    %v94 = vld [vmem:[#allocation3 + $0x160] sm:$0xff]
    %v95 = vld [vmem:[#allocation3 + $0x168] sm:$0xff]
    %v96 = vld [vmem:[#allocation3 + $0x170] sm:$0xff]
    %v97 = vld [vmem:[#allocation3 + $0x178] sm:$0xff]
    %v98 = vld [vmem:[#allocation3 + $0x180] sm:$0xff]
    %v99 = vld [vmem:[#allocation3 + $0x188] sm:$0xff]
    %v100 = vld [vmem:[#allocation3 + $0x190] sm:$0xff]
    %v101 = vld [vmem:[#allocation3 + $0x198] sm:$0xff]
    %v102 = vld [vmem:[#allocation3 + $0x1a0] sm:$0xff]
    %v103 = vld [vmem:[#allocation3 + $0x1a8] sm:$0xff]
    %v104 = vld [vmem:[#allocation3 + $0x1b0] sm:$0xff]
    %v105 = vld [vmem:[#allocation3 + $0x1b8] sm:$0xff]
    %v106 = vld [vmem:[#allocation3 + $0x1c0] sm:$0xff]
    %v107 = vld [vmem:[#allocation3 + $0x1c8] sm:$0xff]
    %v108 = vld [vmem:[#allocation3 + $0x1d0] sm:$0xff]
    %v109 = vld [vmem:[#allocation3 + $0x1d8] sm:$0xff]
    %v110 = vld [vmem:[#allocation3 + $0x1e0] sm:$0xff]
    %v111 = vld [vmem:[#allocation3 + $0x1e8] sm:$0xff]
    %v112 = vld [vmem:[#allocation3 + $0x1f0] sm:$0xff]
    %v113 = vld [vmem:[#allocation3 + $0x1f8] sm:$0xff]
    %v114 = vmax.bf16 %v50, 0
    %v115 = vmax.bf16 %v51, 0
    %v116 = vmax.bf16 %v52, 0
    %v117 = vmax.bf16 %v53, 0
    %v118 = vmax.bf16 %v54, 0
    %v119 = vmax.bf16 %v55, 0
    %v120 = vmax.bf16 %v56, 0
    %v121 = vmax.bf16 %v57, 0
    %v122 = vmax.bf16 %v58, 0
    %v123 = vmax.bf16 %v59, 0
    %v124 = vmax.bf16 %v60, 0
    %v125 = vmax.bf16 %v61, 0
    %v126 = vmax.bf16 %v62, 0
    %v127 = vmax.bf16 %v63, 0
    %v128 = vmax.bf16 %v64, 0
    %v129 = vmax.bf16 %v65, 0
    %v130 = vmax.bf16 %v66, 0
    %v131 = vmax.bf16 %v67, 0
    %v132 = vmax.bf16 %v68, 0
    %v133 = vmax.bf16 %v69, 0
    %v134 = vmax.bf16 %v70, 0
    %v135 = vmax.bf16 %v71, 0
    %v136 = vmax.bf16 %v72, 0
    %v137 = vmax.bf16 %v73, 0
    %v138 = vmax.bf16 %v74, 0
    %v139 = vmax.bf16 %v75, 0
    %v140 = vmax.bf16 %v76, 0
    %v141 = vmax.bf16 %v77, 0
    %v142 = vmax.bf16 %v78, 0
    %v143 = vmax.bf16 %v79, 0
    %v144 = vmax.bf16 %v80, 0
    %v145 = vmax.bf16 %v81, 0
    %v146 = vmax.bf16 %v82, 0
    %v147 = vmax.bf16 %v83, 0
    %v148 = vmax.bf16 %v84, 0
    %v149 = vmax.bf16 %v85, 0
    %v150 = vmax.bf16 %v86, 0
    %v151 = vmax.bf16 %v87, 0
    %v152 = vmax.bf16 %v88, 0
    %v153 = vmax.bf16 %v89, 0
    %v154 = vmax.bf16 %v90, 0
    %v155 = vmax.bf16 %v91, 0
    %v156 = vmax.bf16 %v92, 0
    %v157 = vmax.bf16 %v93, 0
    %v158 = vmax.bf16 %v94, 0
    %v159 = vmax.bf16 %v95, 0
    %v160 = vmax.bf16 %v96, 0
    %v161 = vmax.bf16 %v97, 0
    %v162 = vmax.bf16 %v98, 0
    %v163 = vmax.bf16 %v99, 0
    %v164 = vmax.bf16 %v100, 0
    %v165 = vmax.bf16 %v101, 0
    %v166 = vmax.bf16 %v102, 0
    %v167 = vmax.bf16 %v103, 0
    %v168 = vmax.bf16 %v104, 0
    %v169 = vmax.bf16 %v105, 0
    %v170 = vmax.bf16 %v106, 0
    %v171 = vmax.bf16 %v107, 0
    %v172 = vmax.bf16 %v108, 0
    %v173 = vmax.bf16 %v109, 0
    %v174 = vmax.bf16 %v110, 0
    %v175 = vmax.bf16 %v111, 0
    %v176 = vmax.bf16 %v112, 0
    %v177 = vmax.bf16 %v113, 0
    %v178 = vunpack.c.l.bf16 %v114
    %v179 = vunpack.c.h.bf16 %v114
    %v180 = vunpack.c.l.bf16 %v115
    %v181 = vunpack.c.h.bf16 %v115
    %v182 = vunpack.c.l.bf16 %v116
    %v183 = vunpack.c.h.bf16 %v116
    %v184 = vunpack.c.l.bf16 %v117
    %v185 = vunpack.c.h.bf16 %v117
    %v186 = vunpack.c.l.bf16 %v118
    %v187 = vunpack.c.h.bf16 %v118
    %v188 = vunpack.c.l.bf16 %v119
    %v189 = vunpack.c.h.bf16 %v119
    %v190 = vunpack.c.l.bf16 %v120
    %v191 = vunpack.c.h.bf16 %v120
    %v192 = vunpack.c.l.bf16 %v121
    %v193 = vunpack.c.h.bf16 %v121
    %v194 = vunpack.c.l.bf16 %v122
    %v195 = vunpack.c.h.bf16 %v122
    %v196 = vunpack.c.l.bf16 %v123
    %v197 = vunpack.c.h.bf16 %v123
    %v198 = vunpack.c.l.bf16 %v124
    %v199 = vunpack.c.h.bf16 %v124
    %v200 = vunpack.c.l.bf16 %v125
    %v201 = vunpack.c.h.bf16 %v125
    %v202 = vunpack.c.l.bf16 %v126
    %v203 = vunpack.c.h.bf16 %v126
    %v204 = vunpack.c.l.bf16 %v127
    %v205 = vunpack.c.h.bf16 %v127
    %v206 = vunpack.c.l.bf16 %v128
    %v207 = vunpack.c.h.bf16 %v128
    %v208 = vunpack.c.l.bf16 %v129
    %v209 = vunpack.c.h.bf16 %v129
    %v210 = vunpack.c.l.bf16 %v130
    %v211 = vunpack.c.h.bf16 %v130
    %v212 = vunpack.c.l.bf16 %v131
    %v213 = vunpack.c.h.bf16 %v131
    %v214 = vunpack.c.l.bf16 %v132
    %v215 = vunpack.c.h.bf16 %v132
    %v216 = vunpack.c.l.bf16 %v133
    %v217 = vunpack.c.h.bf16 %v133
    %v218 = vunpack.c.l.bf16 %v134
    %v219 = vunpack.c.h.bf16 %v134
    %v220 = vunpack.c.l.bf16 %v135
    %v221 = vunpack.c.h.bf16 %v135
    %v222 = vunpack.c.l.bf16 %v136
    %v223 = vunpack.c.h.bf16 %v136
    %v224 = vunpack.c.l.bf16 %v137
    %v225 = vunpack.c.h.bf16 %v137
    %v226 = vunpack.c.l.bf16 %v138
    %v227 = vunpack.c.h.bf16 %v138
    %v228 = vunpack.c.l.bf16 %v139
    %v229 = vunpack.c.h.bf16 %v139
    %v230 = vunpack.c.l.bf16 %v140
    %v231 = vunpack.c.h.bf16 %v140
    %v232 = vunpack.c.l.bf16 %v141
    %v233 = vunpack.c.h.bf16 %v141
    %v234 = vunpack.c.l.bf16 %v142
    %v235 = vunpack.c.h.bf16 %v142
    %v236 = vunpack.c.l.bf16 %v143
    %v237 = vunpack.c.h.bf16 %v143
    %v238 = vunpack.c.l.bf16 %v144
    %v239 = vunpack.c.h.bf16 %v144
    %v240 = vunpack.c.l.bf16 %v145
    %v241 = vunpack.c.h.bf16 %v145
    %v242 = vunpack.c.l.bf16 %v146
    %v243 = vunpack.c.h.bf16 %v146
    %v244 = vunpack.c.l.bf16 %v147
    %v245 = vunpack.c.h.bf16 %v147
    %v246 = vunpack.c.l.bf16 %v148
    %v247 = vunpack.c.h.bf16 %v148
    %v248 = vunpack.c.l.bf16 %v149
    %v249 = vunpack.c.h.bf16 %v149
    %v250 = vunpack.c.l.bf16 %v150
    %v251 = vunpack.c.h.bf16 %v150
    %v252 = vunpack.c.l.bf16 %v151
    %v253 = vunpack.c.h.bf16 %v151
    %v254 = vunpack.c.l.bf16 %v152
    %v255 = vunpack.c.h.bf16 %v152
    %v256 = vunpack.c.l.bf16 %v153
    %v257 = vunpack.c.h.bf16 %v153
    %v258 = vunpack.c.l.bf16 %v154
    %v259 = vunpack.c.h.bf16 %v154
    %v260 = vunpack.c.l.bf16 %v155
    %v261 = vunpack.c.h.bf16 %v155
    %v262 = vunpack.c.l.bf16 %v156
    %v263 = vunpack.c.h.bf16 %v156
    %v264 = vunpack.c.l.bf16 %v157
    %v265 = vunpack.c.h.bf16 %v157
    %v266 = vunpack.c.l.bf16 %v158
    %v267 = vunpack.c.h.bf16 %v158
    %v268 = vunpack.c.l.bf16 %v159
    %v269 = vunpack.c.h.bf16 %v159
    %v270 = vunpack.c.l.bf16 %v160
    %v271 = vunpack.c.h.bf16 %v160
    %v272 = vunpack.c.l.bf16 %v161
    %v273 = vunpack.c.h.bf16 %v161
    %v274 = vunpack.c.l.bf16 %v162
    %v275 = vunpack.c.h.bf16 %v162
    %v276 = vunpack.c.l.bf16 %v163
    %v277 = vunpack.c.h.bf16 %v163
    %v278 = vunpack.c.l.bf16 %v164
    %v279 = vunpack.c.h.bf16 %v164
    %v280 = vunpack.c.l.bf16 %v165
    %v281 = vunpack.c.h.bf16 %v165
    %v282 = vunpack.c.l.bf16 %v166
    %v283 = vunpack.c.h.bf16 %v166
    %v284 = vunpack.c.l.bf16 %v167
    %v285 = vunpack.c.h.bf16 %v167
    %v286 = vunpack.c.l.bf16 %v168
    %v287 = vunpack.c.h.bf16 %v168
    %v288 = vunpack.c.l.bf16 %v169
    %v289 = vunpack.c.h.bf16 %v169
    %v290 = vunpack.c.l.bf16 %v170
    %v291 = vunpack.c.h.bf16 %v170
    %v292 = vunpack.c.l.bf16 %v171
    %v293 = vunpack.c.h.bf16 %v171
    %v294 = vunpack.c.l.bf16 %v172
    %v295 = vunpack.c.h.bf16 %v172
    %v296 = vunpack.c.l.bf16 %v173
    %v297 = vunpack.c.h.bf16 %v173
    %v298 = vunpack.c.l.bf16 %v174
    %v299 = vunpack.c.h.bf16 %v174
    %v300 = vunpack.c.l.bf16 %v175
    %v301 = vunpack.c.h.bf16 %v175
    %v302 = vunpack.c.l.bf16 %v176
    %v303 = vunpack.c.h.bf16 %v176
    %v304 = vunpack.c.l.bf16 %v177
    %v305 = vunpack.c.h.bf16 %v177
    %v306 = vadd.f32 %v178, %v186
    %v307 = vrot.slane %v306, 4
    %v308 = vadd.f32 %v306, %v307
    %v309 = vrot.slane %v308, 2
    %v310 = vadd.f32 %v308, %v309
    %v311 = vrot.slane %v310, 1
    %v312 = vadd.f32 %v310, %v311
    %v313 = vadd.f32 %v179, %v187
    %v314 = vrot.slane %v313, 4
    %v315 = vadd.f32 %v313, %v314
    %v316 = vrot.slane %v315, 2
    %v317 = vadd.f32 %v315, %v316
    %v318 = vrot.slane %v317, 1
    %v319 = vadd.f32 %v317, %v318
    %v320 = vadd.f32 %v180, %v188
    %v321 = vrot.slane %v320, 4
    %v322 = vadd.f32 %v320, %v321
    %v323 = vrot.slane %v322, 2
    %v324 = vadd.f32 %v322, %v323
    %v325 = vrot.slane %v324, 1
    %v326 = vadd.f32 %v324, %v325
    %v327 = vadd.f32 %v181, %v189
    %v328 = vrot.slane %v327, 4
    %v329 = vadd.f32 %v327, %v328
    %v330 = vrot.slane %v329, 2
    %v331 = vadd.f32 %v329, %v330
    %v332 = vrot.slane %v331, 1
    %v333 = vadd.f32 %v331, %v332
    %v334 = vadd.f32 %v182, %v190
    %v335 = vrot.slane %v334, 4
    %v336 = vadd.f32 %v334, %v335
    %v337 = vrot.slane %v336, 2
    %v338 = vadd.f32 %v336, %v337
    %v339 = vrot.slane %v338, 1
    %v340 = vadd.f32 %v338, %v339
    %v341 = vadd.f32 %v183, %v191
    %v342 = vrot.slane %v341, 4
    %v343 = vadd.f32 %v341, %v342
    %v344 = vrot.slane %v343, 2
    %v345 = vadd.f32 %v343, %v344
    %v346 = vrot.slane %v345, 1
    %v347 = vadd.f32 %v345, %v346
    %v348 = vadd.f32 %v184, %v192
    %v349 = vrot.slane %v348, 4
    %v350 = vadd.f32 %v348, %v349
    %v351 = vrot.slane %v350, 2
    %v352 = vadd.f32 %v350, %v351
    %v353 = vrot.slane %v352, 1
    %v354 = vadd.f32 %v352, %v353
    %v355 = vadd.f32 %v185, %v193
    %v356 = vrot.slane %v355, 4
    %v357 = vadd.f32 %v355, %v356
    %v358 = vrot.slane %v357, 2
    %v359 = vadd.f32 %v357, %v358
    %v360 = vrot.slane %v359, 1
    %v361 = vadd.f32 %v359, %v360
    %v362 = vadd.f32 %v194, %v202
    %v363 = vrot.slane %v362, 4
    %v364 = vadd.f32 %v362, %v363
    %v365 = vrot.slane %v364, 2
    %v366 = vadd.f32 %v364, %v365
    %v367 = vrot.slane %v366, 1
    %v368 = vadd.f32 %v366, %v367
    %v369 = vadd.f32 %v195, %v203
    %v370 = vrot.slane %v369, 4
    %v371 = vadd.f32 %v369, %v370
    %v372 = vrot.slane %v371, 2
    %v373 = vadd.f32 %v371, %v372
    %v374 = vrot.slane %v373, 1
    %v375 = vadd.f32 %v373, %v374
    %v376 = vadd.f32 %v196, %v204
    %v377 = vrot.slane %v376, 4
    %v378 = vadd.f32 %v376, %v377
    %v379 = vrot.slane %v378, 2
    %v380 = vadd.f32 %v378, %v379
    %v381 = vrot.slane %v380, 1
    %v382 = vadd.f32 %v380, %v381
    %v383 = vadd.f32 %v197, %v205
    %v384 = vrot.slane %v383, 4
    %v385 = vadd.f32 %v383, %v384
    %v386 = vrot.slane %v385, 2
    %v387 = vadd.f32 %v385, %v386
    %v388 = vrot.slane %v387, 1
    %v389 = vadd.f32 %v387, %v388
    %v390 = vadd.f32 %v198, %v206
    %v391 = vrot.slane %v390, 4
    %v392 = vadd.f32 %v390, %v391
    %v393 = vrot.slane %v392, 2
    %v394 = vadd.f32 %v392, %v393
    %v395 = vrot.slane %v394, 1
    %v396 = vadd.f32 %v394, %v395
    %v397 = vadd.f32 %v199, %v207
    %v398 = vrot.slane %v397, 4
    %v399 = vadd.f32 %v397, %v398
    %v400 = vrot.slane %v399, 2
    %v401 = vadd.f32 %v399, %v400
    %v402 = vrot.slane %v401, 1
    %v403 = vadd.f32 %v401, %v402
    %v404 = vadd.f32 %v200, %v208
    %v405 = vrot.slane %v404, 4
    %v406 = vadd.f32 %v404, %v405
    %v407 = vrot.slane %v406, 2
    %v408 = vadd.f32 %v406, %v407
    %v409 = vrot.slane %v408, 1
    %v410 = vadd.f32 %v408, %v409
    %v411 = vadd.f32 %v201, %v209
    %v412 = vrot.slane %v411, 4
    %v413 = vadd.f32 %v411, %v412
    %v414 = vrot.slane %v413, 2
    %v415 = vadd.f32 %v413, %v414
    %v416 = vrot.slane %v415, 1
    %v417 = vadd.f32 %v415, %v416
    %v418 = vadd.f32 %v210, %v218
    %v419 = vrot.slane %v418, 4
    %v420 = vadd.f32 %v418, %v419
    %v421 = vrot.slane %v420, 2
    %v422 = vadd.f32 %v420, %v421
    %v423 = vrot.slane %v422, 1
    %v424 = vadd.f32 %v422, %v423
    %v425 = vadd.f32 %v211, %v219
    %v426 = vrot.slane %v425, 4
    %v427 = vadd.f32 %v425, %v426
    %v428 = vrot.slane %v427, 2
    %v429 = vadd.f32 %v427, %v428
    %v430 = vrot.slane %v429, 1
    %v431 = vadd.f32 %v429, %v430
    %v432 = vadd.f32 %v212, %v220
    %v433 = vrot.slane %v432, 4
    %v434 = vadd.f32 %v432, %v433
    %v435 = vrot.slane %v434, 2
    %v436 = vadd.f32 %v434, %v435
    %v437 = vrot.slane %v436, 1
    %v438 = vadd.f32 %v436, %v437
    %v439 = vadd.f32 %v213, %v221
    %v440 = vrot.slane %v439, 4
    %v441 = vadd.f32 %v439, %v440
    %v442 = vrot.slane %v441, 2
    %v443 = vadd.f32 %v441, %v442
    %v444 = vrot.slane %v443, 1
    %v445 = vadd.f32 %v443, %v444
    %v446 = vadd.f32 %v214, %v222
    %v447 = vrot.slane %v446, 4
    %v448 = vadd.f32 %v446, %v447
    %v449 = vrot.slane %v448, 2
    %v450 = vadd.f32 %v448, %v449
    %v451 = vrot.slane %v450, 1
    %v452 = vadd.f32 %v450, %v451
    %v453 = vadd.f32 %v215, %v223
    %v454 = vrot.slane %v453, 4
    %v455 = vadd.f32 %v453, %v454
    %v456 = vrot.slane %v455, 2
    %v457 = vadd.f32 %v455, %v456
    %v458 = vrot.slane %v457, 1
    %v459 = vadd.f32 %v457, %v458
    %v460 = vadd.f32 %v216, %v224
    %v461 = vrot.slane %v460, 4
    %v462 = vadd.f32 %v460, %v461
    %v463 = vrot.slane %v462, 2
    %v464 = vadd.f32 %v462, %v463
    %v465 = vrot.slane %v464, 1
    %v466 = vadd.f32 %v464, %v465
    %v467 = vadd.f32 %v217, %v225
    %v468 = vrot.slane %v467, 4
    %v469 = vadd.f32 %v467, %v468
    %v470 = vrot.slane %v469, 2
    %v471 = vadd.f32 %v469, %v470
    %v472 = vrot.slane %v471, 1
    %v473 = vadd.f32 %v471, %v472
    %v474 = vadd.f32 %v226, %v234
    %v475 = vrot.slane %v474, 4
    %v476 = vadd.f32 %v474, %v475
    %v477 = vrot.slane %v476, 2
    %v478 = vadd.f32 %v476, %v477
    %v479 = vrot.slane %v478, 1
    %v480 = vadd.f32 %v478, %v479
    %v481 = vadd.f32 %v227, %v235
    %v482 = vrot.slane %v481, 4
    %v483 = vadd.f32 %v481, %v482
    %v484 = vrot.slane %v483, 2
    %v485 = vadd.f32 %v483, %v484
    %v486 = vrot.slane %v485, 1
    %v487 = vadd.f32 %v485, %v486
    %v488 = vadd.f32 %v228, %v236
    %v489 = vrot.slane %v488, 4
    %v490 = vadd.f32 %v488, %v489
    %v491 = vrot.slane %v490, 2
    %v492 = vadd.f32 %v490, %v491
    %v493 = vrot.slane %v492, 1
    %v494 = vadd.f32 %v492, %v493
    %v495 = vadd.f32 %v229, %v237
    %v496 = vrot.slane %v495, 4
    %v497 = vadd.f32 %v495, %v496
    %v498 = vrot.slane %v497, 2
    %v499 = vadd.f32 %v497, %v498
    %v500 = vrot.slane %v499, 1
    %v501 = vadd.f32 %v499, %v500
    %v502 = vadd.f32 %v230, %v238
    %v503 = vrot.slane %v502, 4
    %v504 = vadd.f32 %v502, %v503
    %v505 = vrot.slane %v504, 2
    %v506 = vadd.f32 %v504, %v505
    %v507 = vrot.slane %v506, 1
    %v508 = vadd.f32 %v506, %v507
    %v509 = vadd.f32 %v231, %v239
    %v510 = vrot.slane %v509, 4
    %v511 = vadd.f32 %v509, %v510
    %v512 = vrot.slane %v511, 2
    %v513 = vadd.f32 %v511, %v512
    %v514 = vrot.slane %v513, 1
    %v515 = vadd.f32 %v513, %v514
    %v516 = vadd.f32 %v232, %v240
    %v517 = vrot.slane %v516, 4
    %v518 = vadd.f32 %v516, %v517
    %v519 = vrot.slane %v518, 2
    %v520 = vadd.f32 %v518, %v519
    %v521 = vrot.slane %v520, 1
    %v522 = vadd.f32 %v520, %v521
    %v523 = vadd.f32 %v233, %v241
    %v524 = vrot.slane %v523, 4
    %v525 = vadd.f32 %v523, %v524
    %v526 = vrot.slane %v525, 2
    %v527 = vadd.f32 %v525, %v526
    %v528 = vrot.slane %v527, 1
    %v529 = vadd.f32 %v527, %v528
    %v530 = vadd.f32 %v242, %v250
    %v531 = vrot.slane %v530, 4
    %v532 = vadd.f32 %v530, %v531
    %v533 = vrot.slane %v532, 2
    %v534 = vadd.f32 %v532, %v533
    %v535 = vrot.slane %v534, 1
    %v536 = vadd.f32 %v534, %v535
    %v537 = vadd.f32 %v243, %v251
    %v538 = vrot.slane %v537, 4
    %v539 = vadd.f32 %v537, %v538
    %v540 = vrot.slane %v539, 2
    %v541 = vadd.f32 %v539, %v540
    %v542 = vrot.slane %v541, 1
    %v543 = vadd.f32 %v541, %v542
    %v544 = vadd.f32 %v244, %v252
    %v545 = vrot.slane %v544, 4
    %v546 = vadd.f32 %v544, %v545
    %v547 = vrot.slane %v546, 2
    %v548 = vadd.f32 %v546, %v547
    %v549 = vrot.slane %v548, 1
    %v550 = vadd.f32 %v548, %v549
    %v551 = vadd.f32 %v245, %v253
    %v552 = vrot.slane %v551, 4
    %v553 = vadd.f32 %v551, %v552
    %v554 = vrot.slane %v553, 2
    %v555 = vadd.f32 %v553, %v554
    %v556 = vrot.slane %v555, 1
    %v557 = vadd.f32 %v555, %v556
    %v558 = vadd.f32 %v246, %v254
    %v559 = vrot.slane %v558, 4
    %v560 = vadd.f32 %v558, %v559
    %v561 = vrot.slane %v560, 2
    %v562 = vadd.f32 %v560, %v561
    %v563 = vrot.slane %v562, 1
    %v564 = vadd.f32 %v562, %v563
    %v565 = vadd.f32 %v247, %v255
    %v566 = vrot.slane %v565, 4
    %v567 = vadd.f32 %v565, %v566
    %v568 = vrot.slane %v567, 2
    %v569 = vadd.f32 %v567, %v568
    %v570 = vrot.slane %v569, 1
    %v571 = vadd.f32 %v569, %v570
    %v572 = vadd.f32 %v248, %v256
    %v573 = vrot.slane %v572, 4
    %v574 = vadd.f32 %v572, %v573
    %v575 = vrot.slane %v574, 2
    %v576 = vadd.f32 %v574, %v575
    %v577 = vrot.slane %v576, 1
    %v578 = vadd.f32 %v576, %v577
    %v579 = vadd.f32 %v249, %v257
    %v580 = vrot.slane %v579, 4
    %v581 = vadd.f32 %v579, %v580
    %v582 = vrot.slane %v581, 2
    %v583 = vadd.f32 %v581, %v582
    %v584 = vrot.slane %v583, 1
    %v585 = vadd.f32 %v583, %v584
    %v586 = vadd.f32 %v258, %v266
    %v587 = vrot.slane %v586, 4
    %v588 = vadd.f32 %v586, %v587
    %v589 = vrot.slane %v588, 2
    %v590 = vadd.f32 %v588, %v589
    %v591 = vrot.slane %v590, 1
    %v592 = vadd.f32 %v590, %v591
    %v593 = vadd.f32 %v259, %v267
    %v594 = vrot.slane %v593, 4
    %v595 = vadd.f32 %v593, %v594
    %v596 = vrot.slane %v595, 2
    %v597 = vadd.f32 %v595, %v596
    %v598 = vrot.slane %v597, 1
    %v599 = vadd.f32 %v597, %v598
    %v600 = vadd.f32 %v260, %v268
    %v601 = vrot.slane %v600, 4
    %v602 = vadd.f32 %v600, %v601
    %v603 = vrot.slane %v602, 2
    %v604 = vadd.f32 %v602, %v603
    %v605 = vrot.slane %v604, 1
    %v606 = vadd.f32 %v604, %v605
    %v607 = vadd.f32 %v261, %v269
    %v608 = vrot.slane %v607, 4
    %v609 = vadd.f32 %v607, %v608
    %v610 = vrot.slane %v609, 2
    %v611 = vadd.f32 %v609, %v610
    %v612 = vrot.slane %v611, 1
    %v613 = vadd.f32 %v611, %v612
    %v614 = vadd.f32 %v262, %v270
    %v615 = vrot.slane %v614, 4
    %v616 = vadd.f32 %v614, %v615
    %v617 = vrot.slane %v616, 2
    %v618 = vadd.f32 %v616, %v617
    %v619 = vrot.slane %v618, 1
    %v620 = vadd.f32 %v618, %v619
    %v621 = vadd.f32 %v263, %v271
    %v622 = vrot.slane %v621, 4
    %v623 = vadd.f32 %v621, %v622
    %v624 = vrot.slane %v623, 2
    %v625 = vadd.f32 %v623, %v624
    %v626 = vrot.slane %v625, 1
    %v627 = vadd.f32 %v625, %v626
    %v628 = vadd.f32 %v264, %v272
    %v629 = vrot.slane %v628, 4
    %v630 = vadd.f32 %v628, %v629
    %v631 = vrot.slane %v630, 2
    %v632 = vadd.f32 %v630, %v631
    %v633 = vrot.slane %v632, 1
    %v634 = vadd.f32 %v632, %v633
    %v635 = vadd.f32 %v265, %v273
    %v636 = vrot.slane %v635, 4
    %v637 = vadd.f32 %v635, %v636
    %v638 = vrot.slane %v637, 2
    %v639 = vadd.f32 %v637, %v638
    %v640 = vrot.slane %v639, 1
    %v641 = vadd.f32 %v639, %v640
    %v642 = vadd.f32 %v274, %v282
    %v643 = vrot.slane %v642, 4
    %v644 = vadd.f32 %v642, %v643
    %v645 = vrot.slane %v644, 2
    %v646 = vadd.f32 %v644, %v645
    %v647 = vrot.slane %v646, 1
    %v648 = vadd.f32 %v646, %v647
    %v649 = vadd.f32 %v275, %v283
    %v650 = vrot.slane %v649, 4
    %v651 = vadd.f32 %v649, %v650
    %v652 = vrot.slane %v651, 2
    %v653 = vadd.f32 %v651, %v652
    %v654 = vrot.slane %v653, 1
    %v655 = vadd.f32 %v653, %v654
    %v656 = vadd.f32 %v276, %v284
    %v657 = vrot.slane %v656, 4
    %v658 = vadd.f32 %v656, %v657
    %v659 = vrot.slane %v658, 2
    %v660 = vadd.f32 %v658, %v659
    %v661 = vrot.slane %v660, 1
    %v662 = vadd.f32 %v660, %v661
    %v663 = vadd.f32 %v277, %v285
    %v664 = vrot.slane %v663, 4
    %v665 = vadd.f32 %v663, %v664
    %v666 = vrot.slane %v665, 2
    %v667 = vadd.f32 %v665, %v666
    %v668 = vrot.slane %v667, 1
    %v669 = vadd.f32 %v667, %v668
    %v670 = vadd.f32 %v278, %v286
    %v671 = vrot.slane %v670, 4
    %v672 = vadd.f32 %v670, %v671
    %v673 = vrot.slane %v672, 2
    %v674 = vadd.f32 %v672, %v673
    %v675 = vrot.slane %v674, 1
    %v676 = vadd.f32 %v674, %v675
    %v677 = vadd.f32 %v279, %v287
    %v678 = vrot.slane %v677, 4
    %v679 = vadd.f32 %v677, %v678
    %v680 = vrot.slane %v679, 2
    %v681 = vadd.f32 %v679, %v680
    %v682 = vrot.slane %v681, 1
    %v683 = vadd.f32 %v681, %v682
    %v684 = vadd.f32 %v280, %v288
    %v685 = vrot.slane %v684, 4
    %v686 = vadd.f32 %v684, %v685
    %v687 = vrot.slane %v686, 2
    %v688 = vadd.f32 %v686, %v687
    %v689 = vrot.slane %v688, 1
    %v690 = vadd.f32 %v688, %v689
    %v691 = vadd.f32 %v281, %v289
    %v692 = vrot.slane %v691, 4
    %v693 = vadd.f32 %v691, %v692
    %v694 = vrot.slane %v693, 2
    %v695 = vadd.f32 %v693, %v694
    %v696 = vrot.slane %v695, 1
    %v697 = vadd.f32 %v695, %v696
    %v698 = vadd.f32 %v290, %v298
    %v699 = vrot.slane %v698, 4
    %v700 = vadd.f32 %v698, %v699
    %v701 = vrot.slane %v700, 2
    %v702 = vadd.f32 %v700, %v701
    %v703 = vrot.slane %v702, 1
    %v704 = vadd.f32 %v702, %v703
    %v705 = vadd.f32 %v291, %v299
    %v706 = vrot.slane %v705, 4
    %v707 = vadd.f32 %v705, %v706
    %v708 = vrot.slane %v707, 2
    %v709 = vadd.f32 %v707, %v708
    %v710 = vrot.slane %v709, 1
    %v711 = vadd.f32 %v709, %v710
    %v712 = vadd.f32 %v292, %v300
    %v713 = vrot.slane %v712, 4
    %v714 = vadd.f32 %v712, %v713
    %v715 = vrot.slane %v714, 2
    %v716 = vadd.f32 %v714, %v715
    %v717 = vrot.slane %v716, 1
    %v718 = vadd.f32 %v716, %v717
    %v719 = vadd.f32 %v293, %v301
    %v720 = vrot.slane %v719, 4
    %v721 = vadd.f32 %v719, %v720
    %v722 = vrot.slane %v721, 2
    %v723 = vadd.f32 %v721, %v722
    %v724 = vrot.slane %v723, 1
    %v725 = vadd.f32 %v723, %v724
    %v726 = vadd.f32 %v294, %v302
    %v727 = vrot.slane %v726, 4
    %v728 = vadd.f32 %v726, %v727
    %v729 = vrot.slane %v728, 2
    %v730 = vadd.f32 %v728, %v729
    %v731 = vrot.slane %v730, 1
    %v732 = vadd.f32 %v730, %v731
    %v733 = vadd.f32 %v295, %v303
    %v734 = vrot.slane %v733, 4
    %v735 = vadd.f32 %v733, %v734
    %v736 = vrot.slane %v735, 2
    %v737 = vadd.f32 %v735, %v736
    %v738 = vrot.slane %v737, 1
    %v739 = vadd.f32 %v737, %v738
    %v740 = vadd.f32 %v296, %v304
    %v741 = vrot.slane %v740, 4
    %v742 = vadd.f32 %v740, %v741
    %v743 = vrot.slane %v742, 2
    %v744 = vadd.f32 %v742, %v743
    %v745 = vrot.slane %v744, 1
    %v746 = vadd.f32 %v744, %v745
    %v747 = vadd.f32 %v297, %v305
    %v748 = vrot.slane %v747, 4
    %v749 = vadd.f32 %v747, %v748
    %v750 = vrot.slane %v749, 2
    %v751 = vadd.f32 %v749, %v750
    %v752 = vrot.slane %v751, 1
    %v753 = vadd.f32 %v751, %v752
    %v754 = vmul.f32 %v312, 0.0625
    %v755 = vmul.f32 %v319, 0.0625
    %v756 = vmul.f32 %v326, 0.0625
    %v757 = vmul.f32 %v333, 0.0625
    %v758 = vmul.f32 %v340, 0.0625
    %v759 = vmul.f32 %v347, 0.0625
    %v760 = vmul.f32 %v354, 0.0625
    %v761 = vmul.f32 %v361, 0.0625
    %v762 = vmul.f32 %v368, 0.0625
    %v763 = vmul.f32 %v375, 0.0625
    %v764 = vmul.f32 %v382, 0.0625
    %v765 = vmul.f32 %v389, 0.0625
    %v766 = vmul.f32 %v396, 0.0625
    %v767 = vmul.f32 %v403, 0.0625
    %v768 = vmul.f32 %v410, 0.0625
    %v769 = vmul.f32 %v417, 0.0625
    %v770 = vmul.f32 %v424, 0.0625
    %v771 = vmul.f32 %v431, 0.0625
    %v772 = vmul.f32 %v438, 0.0625
    %v773 = vmul.f32 %v445, 0.0625
    %v774 = vmul.f32 %v452, 0.0625
    %v775 = vmul.f32 %v459, 0.0625
    %v776 = vmul.f32 %v466, 0.0625
    %v777 = vmul.f32 %v473, 0.0625
    %v778 = vmul.f32 %v480, 0.0625
    %v779 = vmul.f32 %v487, 0.0625
    %v780 = vmul.f32 %v494, 0.0625
    %v781 = vmul.f32 %v501, 0.0625
    %v782 = vmul.f32 %v508, 0.0625
    %v783 = vmul.f32 %v515, 0.0625
    %v784 = vmul.f32 %v522, 0.0625
    %v785 = vmul.f32 %v529, 0.0625
    %v786 = vmul.f32 %v536, 0.0625
    %v787 = vmul.f32 %v543, 0.0625
    %v788 = vmul.f32 %v550, 0.0625
    %v789 = vmul.f32 %v557, 0.0625
    %v790 = vmul.f32 %v564, 0.0625
    %v791 = vmul.f32 %v571, 0.0625
    %v792 = vmul.f32 %v578, 0.0625
    %v793 = vmul.f32 %v585, 0.0625
    %v794 = vmul.f32 %v592, 0.0625
    %v795 = vmul.f32 %v599, 0.0625
    %v796 = vmul.f32 %v606, 0.0625
    %v797 = vmul.f32 %v613, 0.0625
    %v798 = vmul.f32 %v620, 0.0625
    %v799 = vmul.f32 %v627, 0.0625
    %v800 = vmul.f32 %v634, 0.0625
    %v801 = vmul.f32 %v641, 0.0625
    %v802 = vmul.f32 %v648, 0.0625
    %v803 = vmul.f32 %v655, 0.0625
    %v804 = vmul.f32 %v662, 0.0625
    %v805 = vmul.f32 %v669, 0.0625
    %v806 = vmul.f32 %v676, 0.0625
    %v807 = vmul.f32 %v683, 0.0625
    %v808 = vmul.f32 %v690, 0.0625
    %v809 = vmul.f32 %v697, 0.0625
    %v810 = vmul.f32 %v704, 0.0625
    %v811 = vmul.f32 %v711, 0.0625
    %v812 = vmul.f32 %v718, 0.0625
    %v813 = vmul.f32 %v725, 0.0625
    %v814 = vmul.f32 %v732, 0.0625
    %v815 = vmul.f32 %v739, 0.0625
    %v816 = vmul.f32 %v746, 0.0625
    %v817 = vmul.f32 %v753, 0.0625
    %v818 = vpack.c.bf16 %v754, %v754
    %v819 = vpack.c.bf16 %v755, %v755
    %v820 = vpack.c.bf16 %v756, %v756
    %v821 = vpack.c.bf16 %v757, %v757
    %v822 = vpack.c.bf16 %v758, %v758
    %v823 = vpack.c.bf16 %v759, %v759
    %v824 = vpack.c.bf16 %v760, %v760
    %v825 = vpack.c.bf16 %v761, %v761
    %v826 = vpack.c.bf16 %v762, %v762
    %v827 = vpack.c.bf16 %v763, %v763
    %v828 = vpack.c.bf16 %v764, %v764
    %v829 = vpack.c.bf16 %v765, %v765
    %v830 = vpack.c.bf16 %v766, %v766
    %v831 = vpack.c.bf16 %v767, %v767
    %v832 = vpack.c.bf16 %v768, %v768
    %v833 = vpack.c.bf16 %v769, %v769
    %v834 = vpack.c.bf16 %v770, %v770
    %v835 = vpack.c.bf16 %v771, %v771
    %v836 = vpack.c.bf16 %v772, %v772
    %v837 = vpack.c.bf16 %v773, %v773
    %v838 = vpack.c.bf16 %v774, %v774
    %v839 = vpack.c.bf16 %v775, %v775
    %v840 = vpack.c.bf16 %v776, %v776
    %v841 = vpack.c.bf16 %v777, %v777
    %v842 = vpack.c.bf16 %v778, %v778
    %v843 = vpack.c.bf16 %v779, %v779
    %v844 = vpack.c.bf16 %v780, %v780
    %v845 = vpack.c.bf16 %v781, %v781
    %v846 = vpack.c.bf16 %v782, %v782
    %v847 = vpack.c.bf16 %v783, %v783
    %v848 = vpack.c.bf16 %v784, %v784
    %v849 = vpack.c.bf16 %v785, %v785
    %v850 = vpack.c.bf16 %v786, %v786
    %v851 = vpack.c.bf16 %v787, %v787
    %v852 = vpack.c.bf16 %v788, %v788
    %v853 = vpack.c.bf16 %v789, %v789
    %v854 = vpack.c.bf16 %v790, %v790
    %v855 = vpack.c.bf16 %v791, %v791
    %v856 = vpack.c.bf16 %v792, %v792
    %v857 = vpack.c.bf16 %v793, %v793
    %v858 = vpack.c.bf16 %v794, %v794
    %v859 = vpack.c.bf16 %v795, %v795
    %v860 = vpack.c.bf16 %v796, %v796
    %v861 = vpack.c.bf16 %v797, %v797
    %v862 = vpack.c.bf16 %v798, %v798
    %v863 = vpack.c.bf16 %v799, %v799
    %v864 = vpack.c.bf16 %v800, %v800
    %v865 = vpack.c.bf16 %v801, %v801
    %v866 = vpack.c.bf16 %v802, %v802
    %v867 = vpack.c.bf16 %v803, %v803
    %v868 = vpack.c.bf16 %v804, %v804
    %v869 = vpack.c.bf16 %v805, %v805
    %v870 = vpack.c.bf16 %v806, %v806
    %v871 = vpack.c.bf16 %v807, %v807
    %v872 = vpack.c.bf16 %v808, %v808
    %v873 = vpack.c.bf16 %v809, %v809
    %v874 = vpack.c.bf16 %v810, %v810
    %v875 = vpack.c.bf16 %v811, %v811
    %v876 = vpack.c.bf16 %v812, %v812
    %v877 = vpack.c.bf16 %v813, %v813
    %v878 = vpack.c.bf16 %v814, %v814
    %v879 = vpack.c.bf16 %v815, %v815
    %v880 = vpack.c.bf16 %v816, %v816
    %v881 = vpack.c.bf16 %v817, %v817
    %v882 = vld [vmem:[#allocation5] sm:$0xff]
    %v883 = vld [vmem:[#allocation5 + $0x8] sm:$0xff]
    %v884 = vld [vmem:[#allocation5 + $0x10] sm:$0xff]
    %v885 = vld [vmem:[#allocation5 + $0x18] sm:$0xff]
    %v886 = vld [vmem:[#allocation5 + $0x20] sm:$0xff]
    %v887 = vld [vmem:[#allocation5 + $0x28] sm:$0xff]
    %v888 = vld [vmem:[#allocation5 + $0x30] sm:$0xff]
    %v889 = vld [vmem:[#allocation5 + $0x38] sm:$0xff]
    %v890 = vld [vmem:[#allocation5 + $0x40] sm:$0xff]
    %v891 = vld [vmem:[#allocation5 + $0x48] sm:$0xff]
    %v892 = vld [vmem:[#allocation5 + $0x50] sm:$0xff]
    %v893 = vld [vmem:[#allocation5 + $0x58] sm:$0xff]
    %v894 = vld [vmem:[#allocation5 + $0x60] sm:$0xff]
    %v895 = vld [vmem:[#allocation5 + $0x68] sm:$0xff]
    %v896 = vld [vmem:[#allocation5 + $0x70] sm:$0xff]
    %v897 = vld [vmem:[#allocation5 + $0x78] sm:$0xff]
    %v898 = vld [vmem:[#allocation5 + $0x80] sm:$0xff]
    %v899 = vld [vmem:[#allocation5 + $0x88] sm:$0xff]
    %v900 = vld [vmem:[#allocation5 + $0x90] sm:$0xff]
    %v901 = vld [vmem:[#allocation5 + $0x98] sm:$0xff]
    %v902 = vld [vmem:[#allocation5 + $0xa0] sm:$0xff]
    %v903 = vld [vmem:[#allocation5 + $0xa8] sm:$0xff]
    %v904 = vld [vmem:[#allocation5 + $0xb0] sm:$0xff]
    %v905 = vld [vmem:[#allocation5 + $0xb8] sm:$0xff]
    %v906 = vld [vmem:[#allocation5 + $0xc0] sm:$0xff]
    %v907 = vld [vmem:[#allocation5 + $0xc8] sm:$0xff]
    %v908 = vld [vmem:[#allocation5 + $0xd0] sm:$0xff]
    %v909 = vld [vmem:[#allocation5 + $0xd8] sm:$0xff]
    %v910 = vld [vmem:[#allocation5 + $0xe0] sm:$0xff]
    %v911 = vld [vmem:[#allocation5 + $0xe8] sm:$0xff]
    %v912 = vld [vmem:[#allocation5 + $0xf0] sm:$0xff]
    %v913 = vld [vmem:[#allocation5 + $0xf8] sm:$0xff]
    %v914 = vld [vmem:[#allocation5 + $0x100] sm:$0xff]
    %v915 = vld [vmem:[#allocation5 + $0x108] sm:$0xff]
    %v916 = vld [vmem:[#allocation5 + $0x110] sm:$0xff]
    %v917 = vld [vmem:[#allocation5 + $0x118] sm:$0xff]
    %v918 = vld [vmem:[#allocation5 + $0x120] sm:$0xff]
    %v919 = vld [vmem:[#allocation5 + $0x128] sm:$0xff]
    %v920 = vld [vmem:[#allocation5 + $0x130] sm:$0xff]
    %v921 = vld [vmem:[#allocation5 + $0x138] sm:$0xff]
    %v922 = vld [vmem:[#allocation5 + $0x140] sm:$0xff]
    %v923 = vld [vmem:[#allocation5 + $0x148] sm:$0xff]
    %v924 = vld [vmem:[#allocation5 + $0x150] sm:$0xff]
    %v925 = vld [vmem:[#allocation5 + $0x158] sm:$0xff]
    %v926 = vld [vmem:[#allocation5 + $0x160] sm:$0xff]
    %v927 = vld [vmem:[#allocation5 + $0x168] sm:$0xff]
    %v928 = vld [vmem:[#allocation5 + $0x170] sm:$0xff]
    %v929 = vld [vmem:[#allocation5 + $0x178] sm:$0xff]
    %v930 = vld [vmem:[#allocation5 + $0x180] sm:$0xff]
    %v931 = vld [vmem:[#allocation5 + $0x188] sm:$0xff]
    %v932 = vld [vmem:[#allocation5 + $0x190] sm:$0xff]
    %v933 = vld [vmem:[#allocation5 + $0x198] sm:$0xff]
    %v934 = vld [vmem:[#allocation5 + $0x1a0] sm:$0xff]
    %v935 = vld [vmem:[#allocation5 + $0x1a8] sm:$0xff]
    %v936 = vld [vmem:[#allocation5 + $0x1b0] sm:$0xff]
    %v937 = vld [vmem:[#allocation5 + $0x1b8] sm:$0xff]
    %v938 = vld [vmem:[#allocation5 + $0x1c0] sm:$0xff]
    %v939 = vld [vmem:[#allocation5 + $0x1c8] sm:$0xff]
    %v940 = vld [vmem:[#allocation5 + $0x1d0] sm:$0xff]
    %v941 = vld [vmem:[#allocation5 + $0x1d8] sm:$0xff]
    %v942 = vld [vmem:[#allocation5 + $0x1e0] sm:$0xff]
    %v943 = vld [vmem:[#allocation5 + $0x1e8] sm:$0xff]
    %v944 = vld [vmem:[#allocation5 + $0x1f0] sm:$0xff]
    %v945 = vld [vmem:[#allocation5 + $0x1f8] sm:$0xff]
    %v946 = vld [vmem:[#allocation5 + $0x200] sm:$0xff]
    %v947 = vld [vmem:[#allocation5 + $0x208] sm:$0xff]
    %v948 = vld [vmem:[#allocation5 + $0x210] sm:$0xff]
    %v949 = vld [vmem:[#allocation5 + $0x218] sm:$0xff]
    %v950 = vld [vmem:[#allocation5 + $0x220] sm:$0xff]
    %v951 = vld [vmem:[#allocation5 + $0x228] sm:$0xff]
    %v952 = vld [vmem:[#allocation5 + $0x230] sm:$0xff]
    %v953 = vld [vmem:[#allocation5 + $0x238] sm:$0xff]
    %v954 = vld [vmem:[#allocation5 + $0x240] sm:$0xff]
    %v955 = vld [vmem:[#allocation5 + $0x248] sm:$0xff]
    %v956 = vld [vmem:[#allocation5 + $0x250] sm:$0xff]
    %v957 = vld [vmem:[#allocation5 + $0x258] sm:$0xff]
    %v958 = vld [vmem:[#allocation5 + $0x260] sm:$0xff]
    %v959 = vld [vmem:[#allocation5 + $0x268] sm:$0xff]
    %v960 = vld [vmem:[#allocation5 + $0x270] sm:$0xff]
    %v961 = vld [vmem:[#allocation5 + $0x278] sm:$0xff]
    %v962 = vld [vmem:[#allocation5 + $0x280] sm:$0xff]
    %v963 = vld [vmem:[#allocation5 + $0x288] sm:$0xff]
    %v964 = vld [vmem:[#allocation5 + $0x290] sm:$0xff]
    %v965 = vld [vmem:[#allocation5 + $0x298] sm:$0xff]
    %v966 = vld [vmem:[#allocation5 + $0x2a0] sm:$0xff]
    %v967 = vld [vmem:[#allocation5 + $0x2a8] sm:$0xff]
    %v968 = vld [vmem:[#allocation5 + $0x2b0] sm:$0xff]
    %v969 = vld [vmem:[#allocation5 + $0x2b8] sm:$0xff]
    %v970 = vld [vmem:[#allocation5 + $0x2c0] sm:$0xff]
    %v971 = vld [vmem:[#allocation5 + $0x2c8] sm:$0xff]
    %v972 = vld [vmem:[#allocation5 + $0x2d0] sm:$0xff]
    %v973 = vld [vmem:[#allocation5 + $0x2d8] sm:$0xff]
    %v974 = vld [vmem:[#allocation5 + $0x2e0] sm:$0xff]
    %v975 = vld [vmem:[#allocation5 + $0x2e8] sm:$0xff]
    %v976 = vld [vmem:[#allocation5 + $0x2f0] sm:$0xff]
    %v977 = vld [vmem:[#allocation5 + $0x2f8] sm:$0xff]
    %v978 = vld [vmem:[#allocation5 + $0x300] sm:$0xff]
    %v979 = vld [vmem:[#allocation5 + $0x308] sm:$0xff]
    %v980 = vld [vmem:[#allocation5 + $0x310] sm:$0xff]
    %v981 = vld [vmem:[#allocation5 + $0x318] sm:$0xff]
    %v982 = vld [vmem:[#allocation5 + $0x320] sm:$0xff]
    %v983 = vld [vmem:[#allocation5 + $0x328] sm:$0xff]
    %v984 = vld [vmem:[#allocation5 + $0x330] sm:$0xff]
    %v985 = vld [vmem:[#allocation5 + $0x338] sm:$0xff]
    %v986 = vld [vmem:[#allocation5 + $0x340] sm:$0xff]
    %v987 = vld [vmem:[#allocation5 + $0x348] sm:$0xff]
    %v988 = vld [vmem:[#allocation5 + $0x350] sm:$0xff]
    %v989 = vld [vmem:[#allocation5 + $0x358] sm:$0xff]
    %v990 = vld [vmem:[#allocation5 + $0x360] sm:$0xff]
    %v991 = vld [vmem:[#allocation5 + $0x368] sm:$0xff]
    %v992 = vld [vmem:[#allocation5 + $0x370] sm:$0xff]
    %v993 = vld [vmem:[#allocation5 + $0x378] sm:$0xff]
    %v994 = vld [vmem:[#allocation5 + $0x380] sm:$0xff]
    %v995 = vld [vmem:[#allocation5 + $0x388] sm:$0xff]
    %v996 = vld [vmem:[#allocation5 + $0x390] sm:$0xff]
    %v997 = vld [vmem:[#allocation5 + $0x398] sm:$0xff]
    %v998 = vld [vmem:[#allocation5 + $0x3a0] sm:$0xff]
    %v999 = vld [vmem:[#allocation5 + $0x3a8] sm:$0xff]
    %v1000 = vld [vmem:[#allocation5 + $0x3b0] sm:$0xff]
    %v1001 = vld [vmem:[#allocation5 + $0x3b8] sm:$0xff]
    %v1002 = vld [vmem:[#allocation5 + $0x3c0] sm:$0xff]
    %v1003 = vld [vmem:[#allocation5 + $0x3c8] sm:$0xff]
    %v1004 = vld [vmem:[#allocation5 + $0x3d0] sm:$0xff]
    %v1005 = vld [vmem:[#allocation5 + $0x3d8] sm:$0xff]
    %v1006 = vld [vmem:[#allocation5 + $0x3e0] sm:$0xff]
    %v1007 = vld [vmem:[#allocation5 + $0x3e8] sm:$0xff]
    %v1008 = vld [vmem:[#allocation5 + $0x3f0] sm:$0xff]
    %v1009 = vld [vmem:[#allocation5 + $0x3f8] sm:$0xff]
    %v1010 = vld [vmem:[#allocation5 + $0x400] sm:$0xff]
    %v1011 = vld [vmem:[#allocation5 + $0x408] sm:$0xff]
    %v1012 = vld [vmem:[#allocation5 + $0x410] sm:$0xff]
    %v1013 = vld [vmem:[#allocation5 + $0x418] sm:$0xff]
    %v1014 = vld [vmem:[#allocation5 + $0x420] sm:$0xff]
    %v1015 = vld [vmem:[#allocation5 + $0x428] sm:$0xff]
    %v1016 = vld [vmem:[#allocation5 + $0x430] sm:$0xff]
    %v1017 = vld [vmem:[#allocation5 + $0x438] sm:$0xff]
    %v1018 = vld [vmem:[#allocation5 + $0x440] sm:$0xff]
    %v1019 = vld [vmem:[#allocation5 + $0x448] sm:$0xff]
    %v1020 = vld [vmem:[#allocation5 + $0x450] sm:$0xff]
    %v1021 = vld [vmem:[#allocation5 + $0x458] sm:$0xff]
    %v1022 = vld [vmem:[#allocation5 + $0x460] sm:$0xff]
    %v1023 = vld [vmem:[#allocation5 + $0x468] sm:$0xff]
    %v1024 = vld [vmem:[#allocation5 + $0x470] sm:$0xff]
    %v1025 = vld [vmem:[#allocation5 + $0x478] sm:$0xff]
    %v1026 = vld [vmem:[#allocation5 + $0x480] sm:$0xff]
    %v1027 = vld [vmem:[#allocation5 + $0x488] sm:$0xff]
    %v1028 = vld [vmem:[#allocation5 + $0x490] sm:$0xff]
    %v1029 = vld [vmem:[#allocation5 + $0x498] sm:$0xff]
    %v1030 = vld [vmem:[#allocation5 + $0x4a0] sm:$0xff]
    %v1031 = vld [vmem:[#allocation5 + $0x4a8] sm:$0xff]
    %v1032 = vld [vmem:[#allocation5 + $0x4b0] sm:$0xff]
    %v1033 = vld [vmem:[#allocation5 + $0x4b8] sm:$0xff]
    %v1034 = vld [vmem:[#allocation5 + $0x4c0] sm:$0xff]
    %v1035 = vld [vmem:[#allocation5 + $0x4c8] sm:$0xff]
    %v1036 = vld [vmem:[#allocation5 + $0x4d0] sm:$0xff]
    %v1037 = vld [vmem:[#allocation5 + $0x4d8] sm:$0xff]
    %v1038 = vld [vmem:[#allocation5 + $0x4e0] sm:$0xff]
    %v1039 = vld [vmem:[#allocation5 + $0x4e8] sm:$0xff]
    %v1040 = vld [vmem:[#allocation5 + $0x4f0] sm:$0xff]
    %v1041 = vld [vmem:[#allocation5 + $0x4f8] sm:$0xff]
    %v1042 = vld [vmem:[#allocation5 + $0x500] sm:$0xff]
    %v1043 = vld [vmem:[#allocation5 + $0x508] sm:$0xff]
    %v1044 = vld [vmem:[#allocation5 + $0x510] sm:$0xff]
    %v1045 = vld [vmem:[#allocation5 + $0x518] sm:$0xff]
    %v1046 = vld [vmem:[#allocation5 + $0x520] sm:$0xff]
    %v1047 = vld [vmem:[#allocation5 + $0x528] sm:$0xff]
    %v1048 = vld [vmem:[#allocation5 + $0x530] sm:$0xff]
    %v1049 = vld [vmem:[#allocation5 + $0x538] sm:$0xff]
    %v1050 = vld [vmem:[#allocation5 + $0x540] sm:$0xff]
    %v1051 = vld [vmem:[#allocation5 + $0x548] sm:$0xff]
    %v1052 = vld [vmem:[#allocation5 + $0x550] sm:$0xff]
    %v1053 = vld [vmem:[#allocation5 + $0x558] sm:$0xff]
    %v1054 = vld [vmem:[#allocation5 + $0x560] sm:$0xff]
    %v1055 = vld [vmem:[#allocation5 + $0x568] sm:$0xff]
    %v1056 = vld [vmem:[#allocation5 + $0x570] sm:$0xff]
    %v1057 = vld [vmem:[#allocation5 + $0x578] sm:$0xff]
    %v1058 = vld [vmem:[#allocation5 + $0x580] sm:$0xff]
    %v1059 = vld [vmem:[#allocation5 + $0x588] sm:$0xff]
    %v1060 = vld [vmem:[#allocation5 + $0x590] sm:$0xff]
    %v1061 = vld [vmem:[#allocation5 + $0x598] sm:$0xff]
    %v1062 = vld [vmem:[#allocation5 + $0x5a0] sm:$0xff]
    %v1063 = vld [vmem:[#allocation5 + $0x5a8] sm:$0xff]
    %v1064 = vld [vmem:[#allocation5 + $0x5b0] sm:$0xff]
    %v1065 = vld [vmem:[#allocation5 + $0x5b8] sm:$0xff]
    %v1066 = vld [vmem:[#allocation5 + $0x5c0] sm:$0xff]
    %v1067 = vld [vmem:[#allocation5 + $0x5c8] sm:$0xff]
    %v1068 = vld [vmem:[#allocation5 + $0x5d0] sm:$0xff]
    %v1069 = vld [vmem:[#allocation5 + $0x5d8] sm:$0xff]
    %v1070 = vld [vmem:[#allocation5 + $0x5e0] sm:$0xff]
    %v1071 = vld [vmem:[#allocation5 + $0x5e8] sm:$0xff]
    %v1072 = vld [vmem:[#allocation5 + $0x5f0] sm:$0xff]
    %v1073 = vld [vmem:[#allocation5 + $0x5f8] sm:$0xff]
    %v1074 = vld [vmem:[#allocation5 + $0x600] sm:$0xff]
    %v1075 = vld [vmem:[#allocation5 + $0x608] sm:$0xff]
    %v1076 = vld [vmem:[#allocation5 + $0x610] sm:$0xff]
    %v1077 = vld [vmem:[#allocation5 + $0x618] sm:$0xff]
    %v1078 = vld [vmem:[#allocation5 + $0x620] sm:$0xff]
    %v1079 = vld [vmem:[#allocation5 + $0x628] sm:$0xff]
    %v1080 = vld [vmem:[#allocation5 + $0x630] sm:$0xff]
    %v1081 = vld [vmem:[#allocation5 + $0x638] sm:$0xff]
    %v1082 = vld [vmem:[#allocation5 + $0x640] sm:$0xff]
    %v1083 = vld [vmem:[#allocation5 + $0x648] sm:$0xff]
    %v1084 = vld [vmem:[#allocation5 + $0x650] sm:$0xff]
    %v1085 = vld [vmem:[#allocation5 + $0x658] sm:$0xff]
    %v1086 = vld [vmem:[#allocation5 + $0x660] sm:$0xff]
    %v1087 = vld [vmem:[#allocation5 + $0x668] sm:$0xff]
    %v1088 = vld [vmem:[#allocation5 + $0x670] sm:$0xff]
    %v1089 = vld [vmem:[#allocation5 + $0x678] sm:$0xff]
    %v1090 = vld [vmem:[#allocation5 + $0x680] sm:$0xff]
    %v1091 = vld [vmem:[#allocation5 + $0x688] sm:$0xff]
    %v1092 = vld [vmem:[#allocation5 + $0x690] sm:$0xff]
    %v1093 = vld [vmem:[#allocation5 + $0x698] sm:$0xff]
    %v1094 = vld [vmem:[#allocation5 + $0x6a0] sm:$0xff]
    %v1095 = vld [vmem:[#allocation5 + $0x6a8] sm:$0xff]
    %v1096 = vld [vmem:[#allocation5 + $0x6b0] sm:$0xff]
    %v1097 = vld [vmem:[#allocation5 + $0x6b8] sm:$0xff]
    %v1098 = vld [vmem:[#allocation5 + $0x6c0] sm:$0xff]
    %v1099 = vld [vmem:[#allocation5 + $0x6c8] sm:$0xff]
    %v1100 = vld [vmem:[#allocation5 + $0x6d0] sm:$0xff]
    %v1101 = vld [vmem:[#allocation5 + $0x6d8] sm:$0xff]
    %v1102 = vld [vmem:[#allocation5 + $0x6e0] sm:$0xff]
    %v1103 = vld [vmem:[#allocation5 + $0x6e8] sm:$0xff]
    %v1104 = vld [vmem:[#allocation5 + $0x6f0] sm:$0xff]
    %v1105 = vld [vmem:[#allocation5 + $0x6f8] sm:$0xff]
    %v1106 = vld [vmem:[#allocation5 + $0x700] sm:$0xff]
    %v1107 = vld [vmem:[#allocation5 + $0x708] sm:$0xff]
    %v1108 = vld [vmem:[#allocation5 + $0x710] sm:$0xff]
    %v1109 = vld [vmem:[#allocation5 + $0x718] sm:$0xff]
    %v1110 = vld [vmem:[#allocation5 + $0x720] sm:$0xff]
    %v1111 = vld [vmem:[#allocation5 + $0x728] sm:$0xff]
    %v1112 = vld [vmem:[#allocation5 + $0x730] sm:$0xff]
    %v1113 = vld [vmem:[#allocation5 + $0x738] sm:$0xff]
    %v1114 = vld [vmem:[#allocation5 + $0x740] sm:$0xff]
    %v1115 = vld [vmem:[#allocation5 + $0x748] sm:$0xff]
    %v1116 = vld [vmem:[#allocation5 + $0x750] sm:$0xff]
    %v1117 = vld [vmem:[#allocation5 + $0x758] sm:$0xff]
    %v1118 = vld [vmem:[#allocation5 + $0x760] sm:$0xff]
    %v1119 = vld [vmem:[#allocation5 + $0x768] sm:$0xff]
    %v1120 = vld [vmem:[#allocation5 + $0x770] sm:$0xff]
    %v1121 = vld [vmem:[#allocation5 + $0x778] sm:$0xff]
    %v1122 = vld [vmem:[#allocation5 + $0x780] sm:$0xff]
    %v1123 = vld [vmem:[#allocation5 + $0x788] sm:$0xff]
    %v1124 = vld [vmem:[#allocation5 + $0x790] sm:$0xff]
    %v1125 = vld [vmem:[#allocation5 + $0x798] sm:$0xff]
    %v1126 = vld [vmem:[#allocation5 + $0x7a0] sm:$0xff]
    %v1127 = vld [vmem:[#allocation5 + $0x7a8] sm:$0xff]
    %v1128 = vld [vmem:[#allocation5 + $0x7b0] sm:$0xff]
    %v1129 = vld [vmem:[#allocation5 + $0x7b8] sm:$0xff]
    %v1130 = vld [vmem:[#allocation5 + $0x7c0] sm:$0xff]
    %v1131 = vld [vmem:[#allocation5 + $0x7c8] sm:$0xff]
    %v1132 = vld [vmem:[#allocation5 + $0x7d0] sm:$0xff]
    %v1133 = vld [vmem:[#allocation5 + $0x7d8] sm:$0xff]
    %v1134 = vld [vmem:[#allocation5 + $0x7e0] sm:$0xff]
    %v1135 = vld [vmem:[#allocation5 + $0x7e8] sm:$0xff]
    %v1136 = vld [vmem:[#allocation5 + $0x7f0] sm:$0xff]
    %v1137 = vld [vmem:[#allocation5 + $0x7f8] sm:$0xff]
    %v1138 = vld [vmem:[%s2] sm:$0xf]
    %v1140 = vlaneseq
    %v1141 = vshrl.u32 %v1140, 7
    %v1142 = vsub.s32 0, %v1141
    %v1143 = vrot.slane %v1138, %v1142
    %v1144 = vlaneseq
    %v1145 = vshrl.u32 %v1144, 7
    %v1146 = vsub.s32 1, %v1145
    %v1147 = vrot.slane %v1138, %v1146
    %v1148 = vlaneseq
    %v1149 = vshrl.u32 %v1148, 7
    %v1150 = vsub.s32 2, %v1149
    %v1151 = vrot.slane %v1138, %v1150
    %v1152 = vlaneseq
    %v1153 = vshrl.u32 %v1152, 7
    %v1154 = vsub.s32 3, %v1153
    %v1155 = vrot.slane %v1138, %v1154
    %v1224 = vunpack.c.l.b16 %v818
    %v1225 = vunpack.c.l.b16 %v819
    %v1226 = vunpack.c.l.b16 %v820
    %v1227 = vunpack.c.l.b16 %v821
    %v1228 = vunpack.c.l.b16 %v822
    %v1229 = vunpack.c.l.b16 %v823
    %v1230 = vunpack.c.l.b16 %v824
    %v1231 = vunpack.c.l.b16 %v825
    %v1232 = vunpack.c.l.b16 %v826
    %v1233 = vunpack.c.l.b16 %v827
    %v1234 = vunpack.c.l.b16 %v828
    %v1235 = vunpack.c.l.b16 %v829
    %v1236 = vunpack.c.l.b16 %v830
    %v1237 = vunpack.c.l.b16 %v831
    %v1238 = vunpack.c.l.b16 %v832
    %v1239 = vunpack.c.l.b16 %v833
    %v1240 = vunpack.c.l.b16 %v834
    %v1241 = vunpack.c.l.b16 %v835
    %v1242 = vunpack.c.l.b16 %v836
    %v1243 = vunpack.c.l.b16 %v837
    %v1244 = vunpack.c.l.b16 %v838
    %v1245 = vunpack.c.l.b16 %v839
    %v1246 = vunpack.c.l.b16 %v840
    %v1247 = vunpack.c.l.b16 %v841
    %v1248 = vunpack.c.l.b16 %v842
    %v1249 = vunpack.c.l.b16 %v843
    %v1250 = vunpack.c.l.b16 %v844
    %v1251 = vunpack.c.l.b16 %v845
    %v1252 = vunpack.c.l.b16 %v846
    %v1253 = vunpack.c.l.b16 %v847
    %v1254 = vunpack.c.l.b16 %v848
    %v1255 = vunpack.c.l.b16 %v849
    %v1256 = vunpack.c.l.b16 %v850
    %v1257 = vunpack.c.l.b16 %v851
    %v1258 = vunpack.c.l.b16 %v852
    %v1259 = vunpack.c.l.b16 %v853
    %v1260 = vunpack.c.l.b16 %v854
    %v1261 = vunpack.c.l.b16 %v855
    %v1262 = vunpack.c.l.b16 %v856
    %v1263 = vunpack.c.l.b16 %v857
    %v1264 = vunpack.c.l.b16 %v858
    %v1265 = vunpack.c.l.b16 %v859
    %v1266 = vunpack.c.l.b16 %v860
    %v1267 = vunpack.c.l.b16 %v861
    %v1268 = vunpack.c.l.b16 %v862
    %v1269 = vunpack.c.l.b16 %v863
    %v1270 = vunpack.c.l.b16 %v864
    %v1271 = vunpack.c.l.b16 %v865
    %v1272 = vunpack.c.l.b16 %v866
    %v1273 = vunpack.c.l.b16 %v867
    %v1274 = vunpack.c.l.b16 %v868
    %v1275 = vunpack.c.l.b16 %v869
    %v1276 = vunpack.c.l.b16 %v870
    %v1277 = vunpack.c.l.b16 %v871
    %v1278 = vunpack.c.l.b16 %v872
    %v1279 = vunpack.c.l.b16 %v873
    %v1280 = vunpack.c.l.b16 %v874
    %v1281 = vunpack.c.l.b16 %v875
    %v1282 = vunpack.c.l.b16 %v876
    %v1283 = vunpack.c.l.b16 %v877
    %v1284 = vunpack.c.l.b16 %v878
    %v1285 = vunpack.c.l.b16 %v879
    %v1286 = vunpack.c.l.b16 %v880
    %v1287 = vunpack.c.l.b16 %v881
    %vm1288 = vcmask 1041409
    %v1289 = vsel %vm1288, %v1232, %v1224
    %vm1290 = vcmask 1042434
    %v1291 = vsel %vm1290, %v1240, %v1289
    %vm1292 = vcmask 1043459
    %v1293 = vsel %vm1292, %v1248, %v1291
    %vm1294 = vcmask 1044484
    %v1295 = vsel %vm1294, %v1256, %v1293
    %vm1296 = vcmask 1045509
    %v1297 = vsel %vm1296, %v1264, %v1295
    %vm1298 = vcmask 1046534
    %v1299 = vsel %vm1298, %v1272, %v1297
    %vm1300 = vcmask 1047559
    %v1301 = vsel %vm1300, %v1280, %v1299
    %v1302 = vsel %vm1288, %v1233, %v1225
    %v1303 = vsel %vm1290, %v1241, %v1302
    %v1304 = vsel %vm1292, %v1249, %v1303
    %v1305 = vsel %vm1294, %v1257, %v1304
    %v1306 = vsel %vm1296, %v1265, %v1305
    %v1307 = vsel %vm1298, %v1273, %v1306
    %v1308 = vsel %vm1300, %v1281, %v1307
    %v1309 = vsel %vm1288, %v1234, %v1226
    %v1310 = vsel %vm1290, %v1242, %v1309
    %v1311 = vsel %vm1292, %v1250, %v1310
    %v1312 = vsel %vm1294, %v1258, %v1311
    %v1313 = vsel %vm1296, %v1266, %v1312
    %v1314 = vsel %vm1298, %v1274, %v1313
    %v1315 = vsel %vm1300, %v1282, %v1314
    %v1316 = vsel %vm1288, %v1235, %v1227
    %v1317 = vsel %vm1290, %v1243, %v1316
    %v1318 = vsel %vm1292, %v1251, %v1317
    %v1319 = vsel %vm1294, %v1259, %v1318
    %v1320 = vsel %vm1296, %v1267, %v1319
    %v1321 = vsel %vm1298, %v1275, %v1320
    %v1322 = vsel %vm1300, %v1283, %v1321
    %v1323 = vsel %vm1288, %v1236, %v1228
    %v1324 = vsel %vm1290, %v1244, %v1323
    %v1325 = vsel %vm1292, %v1252, %v1324
    %v1326 = vsel %vm1294, %v1260, %v1325
    %v1327 = vsel %vm1296, %v1268, %v1326
    %v1328 = vsel %vm1298, %v1276, %v1327
    %v1329 = vsel %vm1300, %v1284, %v1328
    %v1330 = vsel %vm1288, %v1237, %v1229
    %v1331 = vsel %vm1290, %v1245, %v1330
    %v1332 = vsel %vm1292, %v1253, %v1331
    %v1333 = vsel %vm1294, %v1261, %v1332
    %v1334 = vsel %vm1296, %v1269, %v1333
    %v1335 = vsel %vm1298, %v1277, %v1334
    %v1336 = vsel %vm1300, %v1285, %v1335
    %v1337 = vsel %vm1288, %v1238, %v1230
    %v1338 = vsel %vm1290, %v1246, %v1337
    %v1339 = vsel %vm1292, %v1254, %v1338
    %v1340 = vsel %vm1294, %v1262, %v1339
    %v1341 = vsel %vm1296, %v1270, %v1340
    %v1342 = vsel %vm1298, %v1278, %v1341
    %v1343 = vsel %vm1300, %v1286, %v1342
    %v1344 = vsel %vm1288, %v1239, %v1231
    %v1345 = vsel %vm1290, %v1247, %v1344
    %v1346 = vsel %vm1292, %v1255, %v1345
    %v1347 = vsel %vm1294, %v1263, %v1346
    %v1348 = vsel %vm1296, %v1271, %v1347
    %v1349 = vsel %vm1298, %v1279, %v1348
    %v1350 = vsel %vm1300, %v1287, %v1349
    %v1351 = vpack.c.b16 %v1301, %v1301
    %v1352 = vpack.c.b16 %v1308, %v1308
    %v1353 = vpack.c.b16 %v1315, %v1315
    %v1354 = vpack.c.b16 %v1322, %v1322
    %v1355 = vpack.c.b16 %v1329, %v1329
    %v1356 = vpack.c.b16 %v1336, %v1336
    %v1357 = vpack.c.b16 %v1343, %v1343
    %v1358 = vpack.c.b16 %v1350, %v1350
    %v1623 = vunpack.c.l.b16 %v882
    %v1624 = vunpack.c.h.b16 %v882
    %v1625 = vunpack.c.l.b16 %v883
    %v1626 = vunpack.c.h.b16 %v883
    %v1627 = vunpack.c.l.b16 %v884
    %v1628 = vunpack.c.h.b16 %v884
    %v1629 = vunpack.c.l.b16 %v885
    %v1630 = vunpack.c.h.b16 %v885
    %v1631 = vunpack.c.l.b16 %v886
    %v1632 = vunpack.c.h.b16 %v886
    %v1633 = vunpack.c.l.b16 %v887
    %v1634 = vunpack.c.h.b16 %v887
    %v1635 = vunpack.c.l.b16 %v888
    %v1636 = vunpack.c.h.b16 %v888
    %v1637 = vunpack.c.l.b16 %v889
    %v1638 = vunpack.c.h.b16 %v889
    %v1639 = vunpack.c.l.b16 %v890
    %v1640 = vunpack.c.h.b16 %v890
    %v1641 = vunpack.c.l.b16 %v891
    %v1642 = vunpack.c.h.b16 %v891
    %v1643 = vunpack.c.l.b16 %v892
    %v1644 = vunpack.c.h.b16 %v892
    %v1645 = vunpack.c.l.b16 %v893
    %v1646 = vunpack.c.h.b16 %v893
    %v1647 = vunpack.c.l.b16 %v894
    %v1648 = vunpack.c.h.b16 %v894
    %v1649 = vunpack.c.l.b16 %v895
    %v1650 = vunpack.c.h.b16 %v895
    %v1651 = vunpack.c.l.b16 %v896
    %v1652 = vunpack.c.h.b16 %v896
    %v1653 = vunpack.c.l.b16 %v897
    %v1654 = vunpack.c.h.b16 %v897
    %v1655 = vunpack.c.l.b16 %v898
    %v1656 = vunpack.c.h.b16 %v898
    %v1657 = vunpack.c.l.b16 %v899
    %v1658 = vunpack.c.h.b16 %v899
    %v1659 = vunpack.c.l.b16 %v900
    %v1660 = vunpack.c.h.b16 %v900
    %v1661 = vunpack.c.l.b16 %v901
    %v1662 = vunpack.c.h.b16 %v901
    %v1663 = vunpack.c.l.b16 %v902
    %v1664 = vunpack.c.h.b16 %v902
    %v1665 = vunpack.c.l.b16 %v903
    %v1666 = vunpack.c.h.b16 %v903
    %v1667 = vunpack.c.l.b16 %v904
    %v1668 = vunpack.c.h.b16 %v904
    %v1669 = vunpack.c.l.b16 %v905
    %v1670 = vunpack.c.h.b16 %v905
    %v1671 = vunpack.c.l.b16 %v906
    %v1672 = vunpack.c.h.b16 %v906
    %v1673 = vunpack.c.l.b16 %v907
    %v1674 = vunpack.c.h.b16 %v907
    %v1675 = vunpack.c.l.b16 %v908
    %v1676 = vunpack.c.h.b16 %v908
    %v1677 = vunpack.c.l.b16 %v909
    %v1678 = vunpack.c.h.b16 %v909
    %v1679 = vunpack.c.l.b16 %v910
    %v1680 = vunpack.c.h.b16 %v910
    %v1681 = vunpack.c.l.b16 %v911
    %v1682 = vunpack.c.h.b16 %v911
    %v1683 = vunpack.c.l.b16 %v912
    %v1684 = vunpack.c.h.b16 %v912
    %v1685 = vunpack.c.l.b16 %v913
    %v1686 = vunpack.c.h.b16 %v913
    %v1687 = vunpack.c.l.b16 %v914
    %v1688 = vunpack.c.h.b16 %v914
    %v1689 = vunpack.c.l.b16 %v915
    %v1690 = vunpack.c.h.b16 %v915
    %v1691 = vunpack.c.l.b16 %v916
    %v1692 = vunpack.c.h.b16 %v916
    %v1693 = vunpack.c.l.b16 %v917
    %v1694 = vunpack.c.h.b16 %v917
    %v1695 = vunpack.c.l.b16 %v918
    %v1696 = vunpack.c.h.b16 %v918
    %v1697 = vunpack.c.l.b16 %v919
    %v1698 = vunpack.c.h.b16 %v919
    %v1699 = vunpack.c.l.b16 %v920
    %v1700 = vunpack.c.h.b16 %v920
    %v1701 = vunpack.c.l.b16 %v921
    %v1702 = vunpack.c.h.b16 %v921
    %v1703 = vunpack.c.l.b16 %v922
    %v1704 = vunpack.c.h.b16 %v922
    %v1705 = vunpack.c.l.b16 %v923
    %v1706 = vunpack.c.h.b16 %v923
    %v1707 = vunpack.c.l.b16 %v924
    %v1708 = vunpack.c.h.b16 %v924
    %v1709 = vunpack.c.l.b16 %v925
    %v1710 = vunpack.c.h.b16 %v925
    %v1711 = vunpack.c.l.b16 %v926
    %v1712 = vunpack.c.h.b16 %v926
    %v1713 = vunpack.c.l.b16 %v927
    %v1714 = vunpack.c.h.b16 %v927
    %v1715 = vunpack.c.l.b16 %v928
    %v1716 = vunpack.c.h.b16 %v928
    %v1717 = vunpack.c.l.b16 %v929
    %v1718 = vunpack.c.h.b16 %v929
    %v1719 = vunpack.c.l.b16 %v930
    %v1720 = vunpack.c.h.b16 %v930
    %v1721 = vunpack.c.l.b16 %v931
    %v1722 = vunpack.c.h.b16 %v931
    %v1723 = vunpack.c.l.b16 %v932
    %v1724 = vunpack.c.h.b16 %v932
    %v1725 = vunpack.c.l.b16 %v933
    %v1726 = vunpack.c.h.b16 %v933
    %v1727 = vunpack.c.l.b16 %v934
    %v1728 = vunpack.c.h.b16 %v934
    %v1729 = vunpack.c.l.b16 %v935
    %v1730 = vunpack.c.h.b16 %v935
    %v1731 = vunpack.c.l.b16 %v936
    %v1732 = vunpack.c.h.b16 %v936
    %v1733 = vunpack.c.l.b16 %v937
    %v1734 = vunpack.c.h.b16 %v937
    %v1735 = vunpack.c.l.b16 %v938
    %v1736 = vunpack.c.h.b16 %v938
    %v1737 = vunpack.c.l.b16 %v939
    %v1738 = vunpack.c.h.b16 %v939
    %v1739 = vunpack.c.l.b16 %v940
    %v1740 = vunpack.c.h.b16 %v940
    %v1741 = vunpack.c.l.b16 %v941
    %v1742 = vunpack.c.h.b16 %v941
    %v1743 = vunpack.c.l.b16 %v942
    %v1744 = vunpack.c.h.b16 %v942
    %v1745 = vunpack.c.l.b16 %v943
    %v1746 = vunpack.c.h.b16 %v943
    %v1747 = vunpack.c.l.b16 %v944
    %v1748 = vunpack.c.h.b16 %v944
    %v1749 = vunpack.c.l.b16 %v945
    %v1750 = vunpack.c.h.b16 %v945
    %v1751 = vunpack.c.l.b16 %v946
    %v1752 = vunpack.c.h.b16 %v946
    %v1753 = vunpack.c.l.b16 %v947
    %v1754 = vunpack.c.h.b16 %v947
    %v1755 = vunpack.c.l.b16 %v948
    %v1756 = vunpack.c.h.b16 %v948
    %v1757 = vunpack.c.l.b16 %v949
    %v1758 = vunpack.c.h.b16 %v949
    %v1759 = vunpack.c.l.b16 %v950
    %v1760 = vunpack.c.h.b16 %v950
    %v1761 = vunpack.c.l.b16 %v951
    %v1762 = vunpack.c.h.b16 %v951
    %v1763 = vunpack.c.l.b16 %v952
    %v1764 = vunpack.c.h.b16 %v952
    %v1765 = vunpack.c.l.b16 %v953
    %v1766 = vunpack.c.h.b16 %v953
    %v1767 = vunpack.c.l.b16 %v954
    %v1768 = vunpack.c.h.b16 %v954
    %v1769 = vunpack.c.l.b16 %v955
    %v1770 = vunpack.c.h.b16 %v955
    %v1771 = vunpack.c.l.b16 %v956
    %v1772 = vunpack.c.h.b16 %v956
    %v1773 = vunpack.c.l.b16 %v957
    %v1774 = vunpack.c.h.b16 %v957
    %v1775 = vunpack.c.l.b16 %v958
    %v1776 = vunpack.c.h.b16 %v958
    %v1777 = vunpack.c.l.b16 %v959
    %v1778 = vunpack.c.h.b16 %v959
    %v1779 = vunpack.c.l.b16 %v960
    %v1780 = vunpack.c.h.b16 %v960
    %v1781 = vunpack.c.l.b16 %v961
    %v1782 = vunpack.c.h.b16 %v961
    %v1783 = vunpack.c.l.b16 %v962
    %v1784 = vunpack.c.h.b16 %v962
    %v1785 = vunpack.c.l.b16 %v963
    %v1786 = vunpack.c.h.b16 %v963
    %v1787 = vunpack.c.l.b16 %v964
    %v1788 = vunpack.c.h.b16 %v964
    %v1789 = vunpack.c.l.b16 %v965
    %v1790 = vunpack.c.h.b16 %v965
    %v1791 = vunpack.c.l.b16 %v966
    %v1792 = vunpack.c.h.b16 %v966
    %v1793 = vunpack.c.l.b16 %v967
    %v1794 = vunpack.c.h.b16 %v967
    %v1795 = vunpack.c.l.b16 %v968
    %v1796 = vunpack.c.h.b16 %v968
    %v1797 = vunpack.c.l.b16 %v969
    %v1798 = vunpack.c.h.b16 %v969
    %v1799 = vunpack.c.l.b16 %v970
    %v1800 = vunpack.c.h.b16 %v970
    %v1801 = vunpack.c.l.b16 %v971
    %v1802 = vunpack.c.h.b16 %v971
    %v1803 = vunpack.c.l.b16 %v972
    %v1804 = vunpack.c.h.b16 %v972
    %v1805 = vunpack.c.l.b16 %v973
    %v1806 = vunpack.c.h.b16 %v973
    %v1807 = vunpack.c.l.b16 %v974
    %v1808 = vunpack.c.h.b16 %v974
    %v1809 = vunpack.c.l.b16 %v975
    %v1810 = vunpack.c.h.b16 %v975
    %v1811 = vunpack.c.l.b16 %v976
    %v1812 = vunpack.c.h.b16 %v976
    %v1813 = vunpack.c.l.b16 %v977
    %v1814 = vunpack.c.h.b16 %v977
    %v1815 = vunpack.c.l.b16 %v978
    %v1816 = vunpack.c.h.b16 %v978
    %v1817 = vunpack.c.l.b16 %v979
    %v1818 = vunpack.c.h.b16 %v979
    %v1819 = vunpack.c.l.b16 %v980
    %v1820 = vunpack.c.h.b16 %v980
    %v1821 = vunpack.c.l.b16 %v981
    %v1822 = vunpack.c.h.b16 %v981
    %v1823 = vunpack.c.l.b16 %v982
    %v1824 = vunpack.c.h.b16 %v982
    %v1825 = vunpack.c.l.b16 %v983
    %v1826 = vunpack.c.h.b16 %v983
    %v1827 = vunpack.c.l.b16 %v984
    %v1828 = vunpack.c.h.b16 %v984
    %v1829 = vunpack.c.l.b16 %v985
    %v1830 = vunpack.c.h.b16 %v985
    %v1831 = vunpack.c.l.b16 %v986
    %v1832 = vunpack.c.h.b16 %v986
    %v1833 = vunpack.c.l.b16 %v987
    %v1834 = vunpack.c.h.b16 %v987
    %v1835 = vunpack.c.l.b16 %v988
    %v1836 = vunpack.c.h.b16 %v988
    %v1837 = vunpack.c.l.b16 %v989
    %v1838 = vunpack.c.h.b16 %v989
    %v1839 = vunpack.c.l.b16 %v990
    %v1840 = vunpack.c.h.b16 %v990
    %v1841 = vunpack.c.l.b16 %v991
    %v1842 = vunpack.c.h.b16 %v991
    %v1843 = vunpack.c.l.b16 %v992
    %v1844 = vunpack.c.h.b16 %v992
    %v1845 = vunpack.c.l.b16 %v993
    %v1846 = vunpack.c.h.b16 %v993
    %v1847 = vunpack.c.l.b16 %v994
    %v1848 = vunpack.c.h.b16 %v994
    %v1849 = vunpack.c.l.b16 %v995
    %v1850 = vunpack.c.h.b16 %v995
    %v1851 = vunpack.c.l.b16 %v996
    %v1852 = vunpack.c.h.b16 %v996
    %v1853 = vunpack.c.l.b16 %v997
    %v1854 = vunpack.c.h.b16 %v997
    %v1855 = vunpack.c.l.b16 %v998
    %v1856 = vunpack.c.h.b16 %v998
    %v1857 = vunpack.c.l.b16 %v999
    %v1858 = vunpack.c.h.b16 %v999
    %v1859 = vunpack.c.l.b16 %v1000
    %v1860 = vunpack.c.h.b16 %v1000
    %v1861 = vunpack.c.l.b16 %v1001
    %v1862 = vunpack.c.h.b16 %v1001
    %v1863 = vunpack.c.l.b16 %v1002
    %v1864 = vunpack.c.h.b16 %v1002
    %v1865 = vunpack.c.l.b16 %v1003
    %v1866 = vunpack.c.h.b16 %v1003
    %v1867 = vunpack.c.l.b16 %v1004
    %v1868 = vunpack.c.h.b16 %v1004
    %v1869 = vunpack.c.l.b16 %v1005
    %v1870 = vunpack.c.h.b16 %v1005
    %v1871 = vunpack.c.l.b16 %v1006
    %v1872 = vunpack.c.h.b16 %v1006
    %v1873 = vunpack.c.l.b16 %v1007
    %v1874 = vunpack.c.h.b16 %v1007
    %v1875 = vunpack.c.l.b16 %v1008
    %v1876 = vunpack.c.h.b16 %v1008
    %v1877 = vunpack.c.l.b16 %v1009
    %v1878 = vunpack.c.h.b16 %v1009
    %v1879 = vunpack.c.l.b16 %v1010
    %v1880 = vunpack.c.h.b16 %v1010
    %v1881 = vunpack.c.l.b16 %v1011
    %v1882 = vunpack.c.h.b16 %v1011
    %v1883 = vunpack.c.l.b16 %v1012
    %v1884 = vunpack.c.h.b16 %v1012
    %v1885 = vunpack.c.l.b16 %v1013
    %v1886 = vunpack.c.h.b16 %v1013
    %v1887 = vunpack.c.l.b16 %v1014
    %v1888 = vunpack.c.h.b16 %v1014
    %v1889 = vunpack.c.l.b16 %v1015
    %v1890 = vunpack.c.h.b16 %v1015
    %v1891 = vunpack.c.l.b16 %v1016
    %v1892 = vunpack.c.h.b16 %v1016
    %v1893 = vunpack.c.l.b16 %v1017
    %v1894 = vunpack.c.h.b16 %v1017
    %v1895 = vunpack.c.l.b16 %v1018
    %v1896 = vunpack.c.h.b16 %v1018
    %v1897 = vunpack.c.l.b16 %v1019
    %v1898 = vunpack.c.h.b16 %v1019
    %v1899 = vunpack.c.l.b16 %v1020
    %v1900 = vunpack.c.h.b16 %v1020
    %v1901 = vunpack.c.l.b16 %v1021
    %v1902 = vunpack.c.h.b16 %v1021
    %v1903 = vunpack.c.l.b16 %v1022
    %v1904 = vunpack.c.h.b16 %v1022
    %v1905 = vunpack.c.l.b16 %v1023
    %v1906 = vunpack.c.h.b16 %v1023
    %v1907 = vunpack.c.l.b16 %v1024
    %v1908 = vunpack.c.h.b16 %v1024
    %v1909 = vunpack.c.l.b16 %v1025
    %v1910 = vunpack.c.h.b16 %v1025
    %v1911 = vunpack.c.l.b16 %v1026
    %v1912 = vunpack.c.h.b16 %v1026
    %v1913 = vunpack.c.l.b16 %v1027
    %v1914 = vunpack.c.h.b16 %v1027
    %v1915 = vunpack.c.l.b16 %v1028
    %v1916 = vunpack.c.h.b16 %v1028
    %v1917 = vunpack.c.l.b16 %v1029
    %v1918 = vunpack.c.h.b16 %v1029
    %v1919 = vunpack.c.l.b16 %v1030
    %v1920 = vunpack.c.h.b16 %v1030
    %v1921 = vunpack.c.l.b16 %v1031
    %v1922 = vunpack.c.h.b16 %v1031
    %v1923 = vunpack.c.l.b16 %v1032
    %v1924 = vunpack.c.h.b16 %v1032
    %v1925 = vunpack.c.l.b16 %v1033
    %v1926 = vunpack.c.h.b16 %v1033
    %v1927 = vunpack.c.l.b16 %v1034
    %v1928 = vunpack.c.h.b16 %v1034
    %v1929 = vunpack.c.l.b16 %v1035
    %v1930 = vunpack.c.h.b16 %v1035
    %v1931 = vunpack.c.l.b16 %v1036
    %v1932 = vunpack.c.h.b16 %v1036
    %v1933 = vunpack.c.l.b16 %v1037
    %v1934 = vunpack.c.h.b16 %v1037
    %v1935 = vunpack.c.l.b16 %v1038
    %v1936 = vunpack.c.h.b16 %v1038
    %v1937 = vunpack.c.l.b16 %v1039
    %v1938 = vunpack.c.h.b16 %v1039
    %v1939 = vunpack.c.l.b16 %v1040
    %v1940 = vunpack.c.h.b16 %v1040
    %v1941 = vunpack.c.l.b16 %v1041
    %v1942 = vunpack.c.h.b16 %v1041
    %v1943 = vunpack.c.l.b16 %v1042
    %v1944 = vunpack.c.h.b16 %v1042
    %v1945 = vunpack.c.l.b16 %v1043
    %v1946 = vunpack.c.h.b16 %v1043
    %v1947 = vunpack.c.l.b16 %v1044
    %v1948 = vunpack.c.h.b16 %v1044
    %v1949 = vunpack.c.l.b16 %v1045
    %v1950 = vunpack.c.h.b16 %v1045
    %v1951 = vunpack.c.l.b16 %v1046
    %v1952 = vunpack.c.h.b16 %v1046
    %v1953 = vunpack.c.l.b16 %v1047
    %v1954 = vunpack.c.h.b16 %v1047
    %v1955 = vunpack.c.l.b16 %v1048
    %v1956 = vunpack.c.h.b16 %v1048
    %v1957 = vunpack.c.l.b16 %v1049
    %v1958 = vunpack.c.h.b16 %v1049
    %v1959 = vunpack.c.l.b16 %v1050
    %v1960 = vunpack.c.h.b16 %v1050
    %v1961 = vunpack.c.l.b16 %v1051
    %v1962 = vunpack.c.h.b16 %v1051
    %v1963 = vunpack.c.l.b16 %v1052
    %v1964 = vunpack.c.h.b16 %v1052
    %v1965 = vunpack.c.l.b16 %v1053
    %v1966 = vunpack.c.h.b16 %v1053
    %v1967 = vunpack.c.l.b16 %v1054
    %v1968 = vunpack.c.h.b16 %v1054
    %v1969 = vunpack.c.l.b16 %v1055
    %v1970 = vunpack.c.h.b16 %v1055
    %v1971 = vunpack.c.l.b16 %v1056
    %v1972 = vunpack.c.h.b16 %v1056
    %v1973 = vunpack.c.l.b16 %v1057
    %v1974 = vunpack.c.h.b16 %v1057
    %v1975 = vunpack.c.l.b16 %v1058
    %v1976 = vunpack.c.h.b16 %v1058
    %v1977 = vunpack.c.l.b16 %v1059
    %v1978 = vunpack.c.h.b16 %v1059
    %v1979 = vunpack.c.l.b16 %v1060
    %v1980 = vunpack.c.h.b16 %v1060
    %v1981 = vunpack.c.l.b16 %v1061
    %v1982 = vunpack.c.h.b16 %v1061
    %v1983 = vunpack.c.l.b16 %v1062
    %v1984 = vunpack.c.h.b16 %v1062
    %v1985 = vunpack.c.l.b16 %v1063
    %v1986 = vunpack.c.h.b16 %v1063
    %v1987 = vunpack.c.l.b16 %v1064
    %v1988 = vunpack.c.h.b16 %v1064
    %v1989 = vunpack.c.l.b16 %v1065
    %v1990 = vunpack.c.h.b16 %v1065
    %v1991 = vunpack.c.l.b16 %v1066
    %v1992 = vunpack.c.h.b16 %v1066
    %v1993 = vunpack.c.l.b16 %v1067
    %v1994 = vunpack.c.h.b16 %v1067
    %v1995 = vunpack.c.l.b16 %v1068
    %v1996 = vunpack.c.h.b16 %v1068
    %v1997 = vunpack.c.l.b16 %v1069
    %v1998 = vunpack.c.h.b16 %v1069
    %v1999 = vunpack.c.l.b16 %v1070
    %v2000 = vunpack.c.h.b16 %v1070
    %v2001 = vunpack.c.l.b16 %v1071
    %v2002 = vunpack.c.h.b16 %v1071
    %v2003 = vunpack.c.l.b16 %v1072
    %v2004 = vunpack.c.h.b16 %v1072
    %v2005 = vunpack.c.l.b16 %v1073
    %v2006 = vunpack.c.h.b16 %v1073
    %v2007 = vunpack.c.l.b16 %v1074
    %v2008 = vunpack.c.h.b16 %v1074
    %v2009 = vunpack.c.l.b16 %v1075
    %v2010 = vunpack.c.h.b16 %v1075
    %v2011 = vunpack.c.l.b16 %v1076
    %v2012 = vunpack.c.h.b16 %v1076
    %v2013 = vunpack.c.l.b16 %v1077
    %v2014 = vunpack.c.h.b16 %v1077
    %v2015 = vunpack.c.l.b16 %v1078
    %v2016 = vunpack.c.h.b16 %v1078
    %v2017 = vunpack.c.l.b16 %v1079
    %v2018 = vunpack.c.h.b16 %v1079
    %v2019 = vunpack.c.l.b16 %v1080
    %v2020 = vunpack.c.h.b16 %v1080
    %v2021 = vunpack.c.l.b16 %v1081
    %v2022 = vunpack.c.h.b16 %v1081
    %v2023 = vunpack.c.l.b16 %v1082
    %v2024 = vunpack.c.h.b16 %v1082
    %v2025 = vunpack.c.l.b16 %v1083
    %v2026 = vunpack.c.h.b16 %v1083
    %v2027 = vunpack.c.l.b16 %v1084
    %v2028 = vunpack.c.h.b16 %v1084
    %v2029 = vunpack.c.l.b16 %v1085
    %v2030 = vunpack.c.h.b16 %v1085
    %v2031 = vunpack.c.l.b16 %v1086
    %v2032 = vunpack.c.h.b16 %v1086
    %v2033 = vunpack.c.l.b16 %v1087
    %v2034 = vunpack.c.h.b16 %v1087
    %v2035 = vunpack.c.l.b16 %v1088
    %v2036 = vunpack.c.h.b16 %v1088
    %v2037 = vunpack.c.l.b16 %v1089
    %v2038 = vunpack.c.h.b16 %v1089
    %v2039 = vunpack.c.l.b16 %v1090
    %v2040 = vunpack.c.h.b16 %v1090
    %v2041 = vunpack.c.l.b16 %v1091
    %v2042 = vunpack.c.h.b16 %v1091
    %v2043 = vunpack.c.l.b16 %v1092
    %v2044 = vunpack.c.h.b16 %v1092
    %v2045 = vunpack.c.l.b16 %v1093
    %v2046 = vunpack.c.h.b16 %v1093
    %v2047 = vunpack.c.l.b16 %v1094
    %v2048 = vunpack.c.h.b16 %v1094
    %v2049 = vunpack.c.l.b16 %v1095
    %v2050 = vunpack.c.h.b16 %v1095
    %v2051 = vunpack.c.l.b16 %v1096
    %v2052 = vunpack.c.h.b16 %v1096
    %v2053 = vunpack.c.l.b16 %v1097
    %v2054 = vunpack.c.h.b16 %v1097
    %v2055 = vunpack.c.l.b16 %v1098
    %v2056 = vunpack.c.h.b16 %v1098
    %v2057 = vunpack.c.l.b16 %v1099
    %v2058 = vunpack.c.h.b16 %v1099
    %v2059 = vunpack.c.l.b16 %v1100
    %v2060 = vunpack.c.h.b16 %v1100
    %v2061 = vunpack.c.l.b16 %v1101
    %v2062 = vunpack.c.h.b16 %v1101
    %v2063 = vunpack.c.l.b16 %v1102
    %v2064 = vunpack.c.h.b16 %v1102
    %v2065 = vunpack.c.l.b16 %v1103
    %v2066 = vunpack.c.h.b16 %v1103
    %v2067 = vunpack.c.l.b16 %v1104
    %v2068 = vunpack.c.h.b16 %v1104
    %v2069 = vunpack.c.l.b16 %v1105
    %v2070 = vunpack.c.h.b16 %v1105
    %v2071 = vunpack.c.l.b16 %v1106
    %v2072 = vunpack.c.h.b16 %v1106
    %v2073 = vunpack.c.l.b16 %v1107
    %v2074 = vunpack.c.h.b16 %v1107
    %v2075 = vunpack.c.l.b16 %v1108
    %v2076 = vunpack.c.h.b16 %v1108
    %v2077 = vunpack.c.l.b16 %v1109
    %v2078 = vunpack.c.h.b16 %v1109
    %v2079 = vunpack.c.l.b16 %v1110
    %v2080 = vunpack.c.h.b16 %v1110
    %v2081 = vunpack.c.l.b16 %v1111
    %v2082 = vunpack.c.h.b16 %v1111
    %v2083 = vunpack.c.l.b16 %v1112
    %v2084 = vunpack.c.h.b16 %v1112
    %v2085 = vunpack.c.l.b16 %v1113
    %v2086 = vunpack.c.h.b16 %v1113
    %v2087 = vunpack.c.l.b16 %v1114
    %v2088 = vunpack.c.h.b16 %v1114
    %v2089 = vunpack.c.l.b16 %v1115
    %v2090 = vunpack.c.h.b16 %v1115
    %v2091 = vunpack.c.l.b16 %v1116
    %v2092 = vunpack.c.h.b16 %v1116
    %v2093 = vunpack.c.l.b16 %v1117
    %v2094 = vunpack.c.h.b16 %v1117
    %v2095 = vunpack.c.l.b16 %v1118
    %v2096 = vunpack.c.h.b16 %v1118
    %v2097 = vunpack.c.l.b16 %v1119
    %v2098 = vunpack.c.h.b16 %v1119
    %v2099 = vunpack.c.l.b16 %v1120
    %v2100 = vunpack.c.h.b16 %v1120
    %v2101 = vunpack.c.l.b16 %v1121
    %v2102 = vunpack.c.h.b16 %v1121
    %v2103 = vunpack.c.l.b16 %v1122
    %v2104 = vunpack.c.h.b16 %v1122
    %v2105 = vunpack.c.l.b16 %v1123
    %v2106 = vunpack.c.h.b16 %v1123
    %v2107 = vunpack.c.l.b16 %v1124
    %v2108 = vunpack.c.h.b16 %v1124
    %v2109 = vunpack.c.l.b16 %v1125
    %v2110 = vunpack.c.h.b16 %v1125
    %v2111 = vunpack.c.l.b16 %v1126
    %v2112 = vunpack.c.h.b16 %v1126
    %v2113 = vunpack.c.l.b16 %v1127
    %v2114 = vunpack.c.h.b16 %v1127
    %v2115 = vunpack.c.l.b16 %v1128
    %v2116 = vunpack.c.h.b16 %v1128
    %v2117 = vunpack.c.l.b16 %v1129
    %v2118 = vunpack.c.h.b16 %v1129
    %v2119 = vunpack.c.l.b16 %v1130
    %v2120 = vunpack.c.h.b16 %v1130
    %v2121 = vunpack.c.l.b16 %v1131
    %v2122 = vunpack.c.h.b16 %v1131
    %v2123 = vunpack.c.l.b16 %v1132
    %v2124 = vunpack.c.h.b16 %v1132
    %v2125 = vunpack.c.l.b16 %v1133
    %v2126 = vunpack.c.h.b16 %v1133
    %v2127 = vunpack.c.l.b16 %v1134
    %v2128 = vunpack.c.h.b16 %v1134
    %v2129 = vunpack.c.l.b16 %v1135
    %v2130 = vunpack.c.h.b16 %v1135
    %v2131 = vunpack.c.l.b16 %v1136
    %v2132 = vunpack.c.h.b16 %v1136
    %v2133 = vunpack.c.l.b16 %v1137
    %v2134 = vunpack.c.h.b16 %v1137
    %v2135 = vpack.c.b16 %v1627, %v1623
    %v2136 = vpack.c.b16 %v1628, %v1624
    %v2137 = vpack.c.b16 %v1629, %v1625
    %v2138 = vpack.c.b16 %v1630, %v1626
    %v2139 = vpack.c.b16 %v1635, %v1631
    %v2140 = vpack.c.b16 %v1636, %v1632
    %v2141 = vpack.c.b16 %v1637, %v1633
    %v2142 = vpack.c.b16 %v1638, %v1634
    %v2143 = vpack.c.b16 %v1643, %v1639
    %v2144 = vpack.c.b16 %v1644, %v1640
    %v2145 = vpack.c.b16 %v1645, %v1641
    %v2146 = vpack.c.b16 %v1646, %v1642
    %v2147 = vpack.c.b16 %v1651, %v1647
    %v2148 = vpack.c.b16 %v1652, %v1648
    %v2149 = vpack.c.b16 %v1653, %v1649
    %v2150 = vpack.c.b16 %v1654, %v1650
    %v2151 = vpack.c.b16 %v1659, %v1655
    %v2152 = vpack.c.b16 %v1660, %v1656
    %v2153 = vpack.c.b16 %v1661, %v1657
    %v2154 = vpack.c.b16 %v1662, %v1658
    %v2155 = vpack.c.b16 %v1667, %v1663
    %v2156 = vpack.c.b16 %v1668, %v1664
    %v2157 = vpack.c.b16 %v1669, %v1665
    %v2158 = vpack.c.b16 %v1670, %v1666
    %v2159 = vpack.c.b16 %v1675, %v1671
    %v2160 = vpack.c.b16 %v1676, %v1672
    %v2161 = vpack.c.b16 %v1677, %v1673
    %v2162 = vpack.c.b16 %v1678, %v1674
    %v2163 = vpack.c.b16 %v1683, %v1679
    %v2164 = vpack.c.b16 %v1684, %v1680
    %v2165 = vpack.c.b16 %v1685, %v1681
    %v2166 = vpack.c.b16 %v1686, %v1682
    %v2167 = vpack.c.b16 %v1691, %v1687
    %v2168 = vpack.c.b16 %v1692, %v1688
    %v2169 = vpack.c.b16 %v1693, %v1689
    %v2170 = vpack.c.b16 %v1694, %v1690
    %v2171 = vpack.c.b16 %v1699, %v1695
    %v2172 = vpack.c.b16 %v1700, %v1696
    %v2173 = vpack.c.b16 %v1701, %v1697
    %v2174 = vpack.c.b16 %v1702, %v1698
    %v2175 = vpack.c.b16 %v1707, %v1703
    %v2176 = vpack.c.b16 %v1708, %v1704
    %v2177 = vpack.c.b16 %v1709, %v1705
    %v2178 = vpack.c.b16 %v1710, %v1706
    %v2179 = vpack.c.b16 %v1715, %v1711
    %v2180 = vpack.c.b16 %v1716, %v1712
    %v2181 = vpack.c.b16 %v1717, %v1713
    %v2182 = vpack.c.b16 %v1718, %v1714
    %v2183 = vpack.c.b16 %v1723, %v1719
    %v2184 = vpack.c.b16 %v1724, %v1720
    %v2185 = vpack.c.b16 %v1725, %v1721
    %v2186 = vpack.c.b16 %v1726, %v1722
    %v2187 = vpack.c.b16 %v1731, %v1727
    %v2188 = vpack.c.b16 %v1732, %v1728
    %v2189 = vpack.c.b16 %v1733, %v1729
    %v2190 = vpack.c.b16 %v1734, %v1730
    %v2191 = vpack.c.b16 %v1739, %v1735
    %v2192 = vpack.c.b16 %v1740, %v1736
    %v2193 = vpack.c.b16 %v1741, %v1737
    %v2194 = vpack.c.b16 %v1742, %v1738
    %v2195 = vpack.c.b16 %v1747, %v1743
    %v2196 = vpack.c.b16 %v1748, %v1744
    %v2197 = vpack.c.b16 %v1749, %v1745
    %v2198 = vpack.c.b16 %v1750, %v1746
    %v2199 = vpack.c.b16 %v1755, %v1751
    %v2200 = vpack.c.b16 %v1756, %v1752
    %v2201 = vpack.c.b16 %v1757, %v1753
    %v2202 = vpack.c.b16 %v1758, %v1754
    %v2203 = vpack.c.b16 %v1763, %v1759
    %v2204 = vpack.c.b16 %v1764, %v1760
    %v2205 = vpack.c.b16 %v1765, %v1761
    %v2206 = vpack.c.b16 %v1766, %v1762
    %v2207 = vpack.c.b16 %v1771, %v1767
    %v2208 = vpack.c.b16 %v1772, %v1768
    %v2209 = vpack.c.b16 %v1773, %v1769
    %v2210 = vpack.c.b16 %v1774, %v1770
    %v2211 = vpack.c.b16 %v1779, %v1775
    %v2212 = vpack.c.b16 %v1780, %v1776
    %v2213 = vpack.c.b16 %v1781, %v1777
    %v2214 = vpack.c.b16 %v1782, %v1778
    %v2215 = vpack.c.b16 %v1787, %v1783
    %v2216 = vpack.c.b16 %v1788, %v1784
    %v2217 = vpack.c.b16 %v1789, %v1785
    %v2218 = vpack.c.b16 %v1790, %v1786
    %v2219 = vpack.c.b16 %v1795, %v1791
    %v2220 = vpack.c.b16 %v1796, %v1792
    %v2221 = vpack.c.b16 %v1797, %v1793
    %v2222 = vpack.c.b16 %v1798, %v1794
    %v2223 = vpack.c.b16 %v1803, %v1799
    %v2224 = vpack.c.b16 %v1804, %v1800
    %v2225 = vpack.c.b16 %v1805, %v1801
    %v2226 = vpack.c.b16 %v1806, %v1802
    %v2227 = vpack.c.b16 %v1811, %v1807
    %v2228 = vpack.c.b16 %v1812, %v1808
    %v2229 = vpack.c.b16 %v1813, %v1809
    %v2230 = vpack.c.b16 %v1814, %v1810
    %v2231 = vpack.c.b16 %v1819, %v1815
    %v2232 = vpack.c.b16 %v1820, %v1816
    %v2233 = vpack.c.b16 %v1821, %v1817
    %v2234 = vpack.c.b16 %v1822, %v1818
    %v2235 = vpack.c.b16 %v1827, %v1823
    %v2236 = vpack.c.b16 %v1828, %v1824
    %v2237 = vpack.c.b16 %v1829, %v1825
    %v2238 = vpack.c.b16 %v1830, %v1826
    %v2239 = vpack.c.b16 %v1835, %v1831
    %v2240 = vpack.c.b16 %v1836, %v1832
    %v2241 = vpack.c.b16 %v1837, %v1833
    %v2242 = vpack.c.b16 %v1838, %v1834
    %v2243 = vpack.c.b16 %v1843, %v1839
    %v2244 = vpack.c.b16 %v1844, %v1840
    %v2245 = vpack.c.b16 %v1845, %v1841
    %v2246 = vpack.c.b16 %v1846, %v1842
    %v2247 = vpack.c.b16 %v1851, %v1847
    %v2248 = vpack.c.b16 %v1852, %v1848
    %v2249 = vpack.c.b16 %v1853, %v1849
    %v2250 = vpack.c.b16 %v1854, %v1850
    %v2251 = vpack.c.b16 %v1859, %v1855
    %v2252 = vpack.c.b16 %v1860, %v1856
    %v2253 = vpack.c.b16 %v1861, %v1857
    %v2254 = vpack.c.b16 %v1862, %v1858
    %v2255 = vpack.c.b16 %v1867, %v1863
    %v2256 = vpack.c.b16 %v1868, %v1864
    %v2257 = vpack.c.b16 %v1869, %v1865
    %v2258 = vpack.c.b16 %v1870, %v1866
    %v2259 = vpack.c.b16 %v1875, %v1871
    %v2260 = vpack.c.b16 %v1876, %v1872
    %v2261 = vpack.c.b16 %v1877, %v1873
    %v2262 = vpack.c.b16 %v1878, %v1874
    %v2263 = vpack.c.b16 %v1883, %v1879
    %v2264 = vpack.c.b16 %v1884, %v1880
    %v2265 = vpack.c.b16 %v1885, %v1881
    %v2266 = vpack.c.b16 %v1886, %v1882
    %v2267 = vpack.c.b16 %v1891, %v1887
    %v2268 = vpack.c.b16 %v1892, %v1888
    %v2269 = vpack.c.b16 %v1893, %v1889
    %v2270 = vpack.c.b16 %v1894, %v1890
    %v2271 = vpack.c.b16 %v1899, %v1895
    %v2272 = vpack.c.b16 %v1900, %v1896
    %v2273 = vpack.c.b16 %v1901, %v1897
    %v2274 = vpack.c.b16 %v1902, %v1898
    %v2275 = vpack.c.b16 %v1907, %v1903
    %v2276 = vpack.c.b16 %v1908, %v1904
    %v2277 = vpack.c.b16 %v1909, %v1905
    %v2278 = vpack.c.b16 %v1910, %v1906
    %v2279 = vpack.c.b16 %v1915, %v1911
    %v2280 = vpack.c.b16 %v1916, %v1912
    %v2281 = vpack.c.b16 %v1917, %v1913
    %v2282 = vpack.c.b16 %v1918, %v1914
    %v2283 = vpack.c.b16 %v1923, %v1919
    %v2284 = vpack.c.b16 %v1924, %v1920
    %v2285 = vpack.c.b16 %v1925, %v1921
    %v2286 = vpack.c.b16 %v1926, %v1922
    %v2287 = vpack.c.b16 %v1931, %v1927
    %v2288 = vpack.c.b16 %v1932, %v1928
    %v2289 = vpack.c.b16 %v1933, %v1929
    %v2290 = vpack.c.b16 %v1934, %v1930
    %v2291 = vpack.c.b16 %v1939, %v1935
    %v2292 = vpack.c.b16 %v1940, %v1936
    %v2293 = vpack.c.b16 %v1941, %v1937
    %v2294 = vpack.c.b16 %v1942, %v1938
    %v2295 = vpack.c.b16 %v1947, %v1943
    %v2296 = vpack.c.b16 %v1948, %v1944
    %v2297 = vpack.c.b16 %v1949, %v1945
    %v2298 = vpack.c.b16 %v1950, %v1946
    %v2299 = vpack.c.b16 %v1955, %v1951
    %v2300 = vpack.c.b16 %v1956, %v1952
    %v2301 = vpack.c.b16 %v1957, %v1953
    %v2302 = vpack.c.b16 %v1958, %v1954
    %v2303 = vpack.c.b16 %v1963, %v1959
    %v2304 = vpack.c.b16 %v1964, %v1960
    %v2305 = vpack.c.b16 %v1965, %v1961
    %v2306 = vpack.c.b16 %v1966, %v1962
    %v2307 = vpack.c.b16 %v1971, %v1967
    %v2308 = vpack.c.b16 %v1972, %v1968
    %v2309 = vpack.c.b16 %v1973, %v1969
    %v2310 = vpack.c.b16 %v1974, %v1970
    %v2311 = vpack.c.b16 %v1979, %v1975
    %v2312 = vpack.c.b16 %v1980, %v1976
    %v2313 = vpack.c.b16 %v1981, %v1977
    %v2314 = vpack.c.b16 %v1982, %v1978
    %v2315 = vpack.c.b16 %v1987, %v1983
    %v2316 = vpack.c.b16 %v1988, %v1984
    %v2317 = vpack.c.b16 %v1989, %v1985
    %v2318 = vpack.c.b16 %v1990, %v1986
    %v2319 = vpack.c.b16 %v1995, %v1991
    %v2320 = vpack.c.b16 %v1996, %v1992
    %v2321 = vpack.c.b16 %v1997, %v1993
    %v2322 = vpack.c.b16 %v1998, %v1994
    %v2323 = vpack.c.b16 %v2003, %v1999
    %v2324 = vpack.c.b16 %v2004, %v2000
    %v2325 = vpack.c.b16 %v2005, %v2001
    %v2326 = vpack.c.b16 %v2006, %v2002
    %v2327 = vpack.c.b16 %v2011, %v2007
    %v2328 = vpack.c.b16 %v2012, %v2008
    %v2329 = vpack.c.b16 %v2013, %v2009
    %v2330 = vpack.c.b16 %v2014, %v2010
    %v2331 = vpack.c.b16 %v2019, %v2015
    %v2332 = vpack.c.b16 %v2020, %v2016
    %v2333 = vpack.c.b16 %v2021, %v2017
    %v2334 = vpack.c.b16 %v2022, %v2018
    %v2335 = vpack.c.b16 %v2027, %v2023
    %v2336 = vpack.c.b16 %v2028, %v2024
    %v2337 = vpack.c.b16 %v2029, %v2025
    %v2338 = vpack.c.b16 %v2030, %v2026
    %v2339 = vpack.c.b16 %v2035, %v2031
    %v2340 = vpack.c.b16 %v2036, %v2032
    %v2341 = vpack.c.b16 %v2037, %v2033
    %v2342 = vpack.c.b16 %v2038, %v2034
    %v2343 = vpack.c.b16 %v2043, %v2039
    %v2344 = vpack.c.b16 %v2044, %v2040
    %v2345 = vpack.c.b16 %v2045, %v2041
    %v2346 = vpack.c.b16 %v2046, %v2042
    %v2347 = vpack.c.b16 %v2051, %v2047
    %v2348 = vpack.c.b16 %v2052, %v2048
    %v2349 = vpack.c.b16 %v2053, %v2049
    %v2350 = vpack.c.b16 %v2054, %v2050
    %v2351 = vpack.c.b16 %v2059, %v2055
    %v2352 = vpack.c.b16 %v2060, %v2056
    %v2353 = vpack.c.b16 %v2061, %v2057
    %v2354 = vpack.c.b16 %v2062, %v2058
    %v2355 = vpack.c.b16 %v2067, %v2063
    %v2356 = vpack.c.b16 %v2068, %v2064
    %v2357 = vpack.c.b16 %v2069, %v2065
    %v2358 = vpack.c.b16 %v2070, %v2066
    %v2359 = vpack.c.b16 %v2075, %v2071
    %v2360 = vpack.c.b16 %v2076, %v2072
    %v2361 = vpack.c.b16 %v2077, %v2073
    %v2362 = vpack.c.b16 %v2078, %v2074
    %v2363 = vpack.c.b16 %v2083, %v2079
    %v2364 = vpack.c.b16 %v2084, %v2080
    %v2365 = vpack.c.b16 %v2085, %v2081
    %v2366 = vpack.c.b16 %v2086, %v2082
    %v2367 = vpack.c.b16 %v2091, %v2087
    %v2368 = vpack.c.b16 %v2092, %v2088
    %v2369 = vpack.c.b16 %v2093, %v2089
    %v2370 = vpack.c.b16 %v2094, %v2090
    %v2371 = vpack.c.b16 %v2099, %v2095
    %v2372 = vpack.c.b16 %v2100, %v2096
    %v2373 = vpack.c.b16 %v2101, %v2097
    %v2374 = vpack.c.b16 %v2102, %v2098
    %v2375 = vpack.c.b16 %v2107, %v2103
    %v2376 = vpack.c.b16 %v2108, %v2104
    %v2377 = vpack.c.b16 %v2109, %v2105
    %v2378 = vpack.c.b16 %v2110, %v2106
    %v2379 = vpack.c.b16 %v2115, %v2111
    %v2380 = vpack.c.b16 %v2116, %v2112
    %v2381 = vpack.c.b16 %v2117, %v2113
    %v2382 = vpack.c.b16 %v2118, %v2114
    %v2383 = vpack.c.b16 %v2123, %v2119
    %v2384 = vpack.c.b16 %v2124, %v2120
    %v2385 = vpack.c.b16 %v2125, %v2121
    %v2386 = vpack.c.b16 %v2126, %v2122
    %v2387 = vpack.c.b16 %v2131, %v2127
    %v2388 = vpack.c.b16 %v2132, %v2128
    %v2389 = vpack.c.b16 %v2133, %v2129
    %v2390 = vpack.c.b16 %v2134, %v2130
    %2647 = vmatprep.subr.bf16.mxu0 %v2136
    %2648 = vmatpush1.bf16.msra.mxu0 %v2135
    %2649 = vmatprep.subr.bf16.mxu0 %v2140
    %2650 = vmatpush1.bf16.msra.mxu0 %v2139
    %2651 = vmatprep.subr.bf16.mxu0 %v2144
    %2652 = vmatpush1.bf16.msra.mxu0 %v2143
    %2653 = vmatprep.subr.bf16.mxu0 %v2148
    %2654 = vmatpush1.bf16.msra.mxu0 %v2147
    %2655 = vmatprep.subr.bf16.mxu0 %v2152
    %2656 = vmatpush1.bf16.msra.mxu0 %v2151
    %2657 = vmatprep.subr.bf16.mxu0 %v2156
    %2658 = vmatpush1.bf16.msra.mxu0 %v2155
    %2659 = vmatprep.subr.bf16.mxu0 %v2160
    %2660 = vmatpush1.bf16.msra.mxu0 %v2159
    %2661 = vmatprep.subr.bf16.mxu0 %v2164
    %2662 = vmatpush1.bf16.msra.mxu0 %v2163
    %2663 = vmatprep.subr.bf16.mxu0 %v2168
    %2664 = vmatpush1.bf16.msra.mxu0 %v2167
    %2665 = vmatprep.subr.bf16.mxu0 %v2172
    %2666 = vmatpush1.bf16.msra.mxu0 %v2171
    %2667 = vmatprep.subr.bf16.mxu0 %v2176
    %2668 = vmatpush1.bf16.msra.mxu0 %v2175
    %2669 = vmatprep.subr.bf16.mxu0 %v2180
    %2670 = vmatpush1.bf16.msra.mxu0 %v2179
    %2671 = vmatprep.subr.bf16.mxu0 %v2184
    %2672 = vmatpush1.bf16.msra.mxu0 %v2183
    %2673 = vmatprep.subr.bf16.mxu0 %v2188
    %2674 = vmatpush1.bf16.msra.mxu0 %v2187
    %2675 = vmatprep.subr.bf16.mxu0 %v2192
    %2676 = vmatpush1.bf16.msra.mxu0 %v2191
    %2677 = vmatprep.subr.bf16.mxu0 %v2196
    %2678 = vmatpush1.bf16.msra.mxu0 %v2195
    %2679 = vmatprep.mubr.bf16.mxu0 %v1352
    %2680 = vmatmul.mubr.bf16.gmra.mrb[0].mxu0 %v1351
    %v2681 = vpop.f32.mrb[0].mxu0
    %v2682 = vadd.f32 %v1143, %v2681
    %v2683 = vpop.f32.mrb[0].mxu0
    %v2684 = vadd.f32 %v1147, %v2683
    %v2685 = vpop.f32.mrb[0].mxu0
    %v2686 = vpop.f32.mrb[0].mxu0
    %2687 = vdwg.mxu0
    %2688 = vmatprep.subr.bf16.mxu0 %v2200
    %2689 = vmatpush1.bf16.msra.mxu0 %v2199
    %2690 = vmatprep.subr.bf16.mxu0 %v2204
    %2691 = vmatpush1.bf16.msra.mxu0 %v2203
    %2692 = vmatprep.subr.bf16.mxu0 %v2208
    %2693 = vmatpush1.bf16.msra.mxu0 %v2207
    %2694 = vmatprep.subr.bf16.mxu0 %v2212
    %2695 = vmatpush1.bf16.msra.mxu0 %v2211
    %2696 = vmatprep.subr.bf16.mxu0 %v2216
    %2697 = vmatpush1.bf16.msra.mxu0 %v2215
    %2698 = vmatprep.subr.bf16.mxu0 %v2220
    %2699 = vmatpush1.bf16.msra.mxu0 %v2219
    %2700 = vmatprep.subr.bf16.mxu0 %v2224
    %2701 = vmatpush1.bf16.msra.mxu0 %v2223
    %2702 = vmatprep.subr.bf16.mxu0 %v2228
    %2703 = vmatpush1.bf16.msra.mxu0 %v2227
    %2704 = vmatprep.subr.bf16.mxu0 %v2232
    %2705 = vmatpush1.bf16.msra.mxu0 %v2231
    %2706 = vmatprep.subr.bf16.mxu0 %v2236
    %2707 = vmatpush1.bf16.msra.mxu0 %v2235
    %2708 = vmatprep.subr.bf16.mxu0 %v2240
    %2709 = vmatpush1.bf16.msra.mxu0 %v2239
    %2710 = vmatprep.subr.bf16.mxu0 %v2244
    %2711 = vmatpush1.bf16.msra.mxu0 %v2243
    %2712 = vmatprep.subr.bf16.mxu0 %v2248
    %2713 = vmatpush1.bf16.msra.mxu0 %v2247
    %2714 = vmatprep.subr.bf16.mxu0 %v2252
    %2715 = vmatpush1.bf16.msra.mxu0 %v2251
    %2716 = vmatprep.subr.bf16.mxu0 %v2256
    %2717 = vmatpush1.bf16.msra.mxu0 %v2255
    %2718 = vmatprep.subr.bf16.mxu0 %v2260
    %2719 = vmatpush1.bf16.msra.mxu0 %v2259
    %2720 = vmatprep.mubr.bf16.mxu0 %v1354
    %2721 = vmatmul.mubr.bf16.gmra.mrb[0].mxu0 %v1353
    %v2722 = vpop.f32.mrb[0].mxu0
    %v2723 = vadd.f32 %v2682, %v2722
    %v2724 = vpop.f32.mrb[0].mxu0
    %v2725 = vadd.f32 %v2684, %v2724
    %v2726 = vpop.f32.mrb[0].mxu0
    %v2727 = vpop.f32.mrb[0].mxu0
    %2728 = vdwg.mxu0
    %2729 = vmatprep.subr.bf16.mxu0 %v2264
    %2730 = vmatpush1.bf16.msra.mxu0 %v2263
    %2731 = vmatprep.subr.bf16.mxu0 %v2268
    %2732 = vmatpush1.bf16.msra.mxu0 %v2267
    %2733 = vmatprep.subr.bf16.mxu0 %v2272
    %2734 = vmatpush1.bf16.msra.mxu0 %v2271
    %2735 = vmatprep.subr.bf16.mxu0 %v2276
    %2736 = vmatpush1.bf16.msra.mxu0 %v2275
    %2737 = vmatprep.subr.bf16.mxu0 %v2280
    %2738 = vmatpush1.bf16.msra.mxu0 %v2279
    %2739 = vmatprep.subr.bf16.mxu0 %v2284
    %2740 = vmatpush1.bf16.msra.mxu0 %v2283
    %2741 = vmatprep.subr.bf16.mxu0 %v2288
    %2742 = vmatpush1.bf16.msra.mxu0 %v2287
    %2743 = vmatprep.subr.bf16.mxu0 %v2292
    %2744 = vmatpush1.bf16.msra.mxu0 %v2291
    %2745 = vmatprep.subr.bf16.mxu0 %v2296
    %2746 = vmatpush1.bf16.msra.mxu0 %v2295
    %2747 = vmatprep.subr.bf16.mxu0 %v2300
    %2748 = vmatpush1.bf16.msra.mxu0 %v2299
    %2749 = vmatprep.subr.bf16.mxu0 %v2304
    %2750 = vmatpush1.bf16.msra.mxu0 %v2303
    %2751 = vmatprep.subr.bf16.mxu0 %v2308
    %2752 = vmatpush1.bf16.msra.mxu0 %v2307
    %2753 = vmatprep.subr.bf16.mxu0 %v2312
    %2754 = vmatpush1.bf16.msra.mxu0 %v2311
    %2755 = vmatprep.subr.bf16.mxu0 %v2316
    %2756 = vmatpush1.bf16.msra.mxu0 %v2315
    %2757 = vmatprep.subr.bf16.mxu0 %v2320
    %2758 = vmatpush1.bf16.msra.mxu0 %v2319
    %2759 = vmatprep.subr.bf16.mxu0 %v2324
    %2760 = vmatpush1.bf16.msra.mxu0 %v2323
    %2761 = vmatprep.mubr.bf16.mxu0 %v1356
    %2762 = vmatmul.mubr.bf16.gmra.mrb[0].mxu0 %v1355
    %v2763 = vpop.f32.mrb[0].mxu0
    %v2764 = vadd.f32 %v2723, %v2763
    %v2765 = vpop.f32.mrb[0].mxu0
    %v2766 = vadd.f32 %v2725, %v2765
    %v2767 = vpop.f32.mrb[0].mxu0
    %v2768 = vpop.f32.mrb[0].mxu0
    %2769 = vdwg.mxu0
    %2770 = vmatprep.subr.bf16.mxu0 %v2328
    %2771 = vmatpush1.bf16.msra.mxu0 %v2327
    %2772 = vmatprep.subr.bf16.mxu0 %v2332
    %2773 = vmatpush1.bf16.msra.mxu0 %v2331
    %2774 = vmatprep.subr.bf16.mxu0 %v2336
    %2775 = vmatpush1.bf16.msra.mxu0 %v2335
    %2776 = vmatprep.subr.bf16.mxu0 %v2340
    %2777 = vmatpush1.bf16.msra.mxu0 %v2339
    %2778 = vmatprep.subr.bf16.mxu0 %v2344
    %2779 = vmatpush1.bf16.msra.mxu0 %v2343
    %2780 = vmatprep.subr.bf16.mxu0 %v2348
    %2781 = vmatpush1.bf16.msra.mxu0 %v2347
    %2782 = vmatprep.subr.bf16.mxu0 %v2352
    %2783 = vmatpush1.bf16.msra.mxu0 %v2351
    %2784 = vmatprep.subr.bf16.mxu0 %v2356
    %2785 = vmatpush1.bf16.msra.mxu0 %v2355
    %2786 = vmatprep.subr.bf16.mxu0 %v2360
    %2787 = vmatpush1.bf16.msra.mxu0 %v2359
    %2788 = vmatprep.subr.bf16.mxu0 %v2364
    %2789 = vmatpush1.bf16.msra.mxu0 %v2363
    %2790 = vmatprep.subr.bf16.mxu0 %v2368
    %2791 = vmatpush1.bf16.msra.mxu0 %v2367
    %2792 = vmatprep.subr.bf16.mxu0 %v2372
    %2793 = vmatpush1.bf16.msra.mxu0 %v2371
    %2794 = vmatprep.subr.bf16.mxu0 %v2376
    %2795 = vmatpush1.bf16.msra.mxu0 %v2375
    %2796 = vmatprep.subr.bf16.mxu0 %v2380
    %2797 = vmatpush1.bf16.msra.mxu0 %v2379
    %2798 = vmatprep.subr.bf16.mxu0 %v2384
    %2799 = vmatpush1.bf16.msra.mxu0 %v2383
    %2800 = vmatprep.subr.bf16.mxu0 %v2388
    %2801 = vmatpush1.bf16.msra.mxu0 %v2387
    %2802 = vmatprep.mubr.bf16.mxu0 %v1358
    %2803 = vmatmul.mubr.bf16.gmra.mrb[0].mxu0 %v1357
    %v2804 = vpop.f32.mrb[0].mxu0
    %v2805 = vadd.f32 %v2764, %v2804
    %v2806 = vpop.f32.mrb[0].mxu0
    %v2807 = vadd.f32 %v2766, %v2806
    %v2808 = vpop.f32.mrb[0].mxu0
    %v2809 = vpop.f32.mrb[0].mxu0
    %2810 = vdwg.mxu0
    %2811 = vmatprep.subr.bf16.mxu0 %v2138
    %2812 = vmatpush1.bf16.msra.mxu0 %v2137
    %2813 = vmatprep.subr.bf16.mxu0 %v2142
    %2814 = vmatpush1.bf16.msra.mxu0 %v2141
    %2815 = vmatprep.subr.bf16.mxu0 %v2146
    %2816 = vmatpush1.bf16.msra.mxu0 %v2145
    %2817 = vmatprep.subr.bf16.mxu0 %v2150
    %2818 = vmatpush1.bf16.msra.mxu0 %v2149
    %2819 = vmatprep.subr.bf16.mxu0 %v2154
    %2820 = vmatpush1.bf16.msra.mxu0 %v2153
    %2821 = vmatprep.subr.bf16.mxu0 %v2158
    %2822 = vmatpush1.bf16.msra.mxu0 %v2157
    %2823 = vmatprep.subr.bf16.mxu0 %v2162
    %2824 = vmatpush1.bf16.msra.mxu0 %v2161
    %2825 = vmatprep.subr.bf16.mxu0 %v2166
    %2826 = vmatpush1.bf16.msra.mxu0 %v2165
    %2827 = vmatprep.subr.bf16.mxu0 %v2170
    %2828 = vmatpush1.bf16.msra.mxu0 %v2169
    %2829 = vmatprep.subr.bf16.mxu0 %v2174
    %2830 = vmatpush1.bf16.msra.mxu0 %v2173
    %2831 = vmatprep.subr.bf16.mxu0 %v2178
    %2832 = vmatpush1.bf16.msra.mxu0 %v2177
    %2833 = vmatprep.subr.bf16.mxu0 %v2182
    %2834 = vmatpush1.bf16.msra.mxu0 %v2181
    %2835 = vmatprep.subr.bf16.mxu0 %v2186
    %2836 = vmatpush1.bf16.msra.mxu0 %v2185
    %2837 = vmatprep.subr.bf16.mxu0 %v2190
    %2838 = vmatpush1.bf16.msra.mxu0 %v2189
    %2839 = vmatprep.subr.bf16.mxu0 %v2194
    %2840 = vmatpush1.bf16.msra.mxu0 %v2193
    %2841 = vmatprep.subr.bf16.mxu0 %v2198
    %2842 = vmatpush1.bf16.msra.mxu0 %v2197
    %2843 = vmatprep.mubr.bf16.mxu0 %v1352
    %2844 = vmatmul.mubr.bf16.gmra.mrb[0].mxu0 %v1351
    %v2845 = vpop.f32.mrb[0].mxu0
    %v2846 = vadd.f32 %v1151, %v2845
    %v2847 = vpop.f32.mrb[0].mxu0
    %v2848 = vadd.f32 %v1155, %v2847
    %v2849 = vpop.f32.mrb[0].mxu0
    %v2850 = vpop.f32.mrb[0].mxu0
    %2851 = vdwg.mxu0
    %2852 = vmatprep.subr.bf16.mxu0 %v2202
    %2853 = vmatpush1.bf16.msra.mxu0 %v2201
    %2854 = vmatprep.subr.bf16.mxu0 %v2206
    %2855 = vmatpush1.bf16.msra.mxu0 %v2205
    %2856 = vmatprep.subr.bf16.mxu0 %v2210
    %2857 = vmatpush1.bf16.msra.mxu0 %v2209
    %2858 = vmatprep.subr.bf16.mxu0 %v2214
    %2859 = vmatpush1.bf16.msra.mxu0 %v2213
    %2860 = vmatprep.subr.bf16.mxu0 %v2218
    %2861 = vmatpush1.bf16.msra.mxu0 %v2217
    %2862 = vmatprep.subr.bf16.mxu0 %v2222
    %2863 = vmatpush1.bf16.msra.mxu0 %v2221
    %2864 = vmatprep.subr.bf16.mxu0 %v2226
    %2865 = vmatpush1.bf16.msra.mxu0 %v2225
    %2866 = vmatprep.subr.bf16.mxu0 %v2230
    %2867 = vmatpush1.bf16.msra.mxu0 %v2229
    %2868 = vmatprep.subr.bf16.mxu0 %v2234
    %2869 = vmatpush1.bf16.msra.mxu0 %v2233
    %2870 = vmatprep.subr.bf16.mxu0 %v2238
    %2871 = vmatpush1.bf16.msra.mxu0 %v2237
    %2872 = vmatprep.subr.bf16.mxu0 %v2242
    %2873 = vmatpush1.bf16.msra.mxu0 %v2241
    %2874 = vmatprep.subr.bf16.mxu0 %v2246
    %2875 = vmatpush1.bf16.msra.mxu0 %v2245
    %2876 = vmatprep.subr.bf16.mxu0 %v2250
    %2877 = vmatpush1.bf16.msra.mxu0 %v2249
    %2878 = vmatprep.subr.bf16.mxu0 %v2254
    %2879 = vmatpush1.bf16.msra.mxu0 %v2253
    %2880 = vmatprep.subr.bf16.mxu0 %v2258
    %2881 = vmatpush1.bf16.msra.mxu0 %v2257
    %2882 = vmatprep.subr.bf16.mxu0 %v2262
    %2883 = vmatpush1.bf16.msra.mxu0 %v2261
    %2884 = vmatprep.mubr.bf16.mxu0 %v1354
    %2885 = vmatmul.mubr.bf16.gmra.mrb[0].mxu0 %v1353
    %v2886 = vpop.f32.mrb[0].mxu0
    %v2887 = vadd.f32 %v2846, %v2886
    %v2888 = vpop.f32.mrb[0].mxu0
    %v2889 = vadd.f32 %v2848, %v2888
    %v2890 = vpop.f32.mrb[0].mxu0
    %v2891 = vpop.f32.mrb[0].mxu0
    %2892 = vdwg.mxu0
    %2893 = vmatprep.subr.bf16.mxu0 %v2266
    %2894 = vmatpush1.bf16.msra.mxu0 %v2265
    %2895 = vmatprep.subr.bf16.mxu0 %v2270
    %2896 = vmatpush1.bf16.msra.mxu0 %v2269
    %2897 = vmatprep.subr.bf16.mxu0 %v2274
    %2898 = vmatpush1.bf16.msra.mxu0 %v2273
    %2899 = vmatprep.subr.bf16.mxu0 %v2278
    %2900 = vmatpush1.bf16.msra.mxu0 %v2277
    %2901 = vmatprep.subr.bf16.mxu0 %v2282
    %2902 = vmatpush1.bf16.msra.mxu0 %v2281
    %2903 = vmatprep.subr.bf16.mxu0 %v2286
    %2904 = vmatpush1.bf16.msra.mxu0 %v2285
    %2905 = vmatprep.subr.bf16.mxu0 %v2290
    %2906 = vmatpush1.bf16.msra.mxu0 %v2289
    %2907 = vmatprep.subr.bf16.mxu0 %v2294
    %2908 = vmatpush1.bf16.msra.mxu0 %v2293
    %2909 = vmatprep.subr.bf16.mxu0 %v2298
    %2910 = vmatpush1.bf16.msra.mxu0 %v2297
    %2911 = vmatprep.subr.bf16.mxu0 %v2302
    %2912 = vmatpush1.bf16.msra.mxu0 %v2301
    %2913 = vmatprep.subr.bf16.mxu0 %v2306
    %2914 = vmatpush1.bf16.msra.mxu0 %v2305
    %2915 = vmatprep.subr.bf16.mxu0 %v2310
    %2916 = vmatpush1.bf16.msra.mxu0 %v2309
    %2917 = vmatprep.subr.bf16.mxu0 %v2314
    %2918 = vmatpush1.bf16.msra.mxu0 %v2313
    %2919 = vmatprep.subr.bf16.mxu0 %v2318
    %2920 = vmatpush1.bf16.msra.mxu0 %v2317
    %2921 = vmatprep.subr.bf16.mxu0 %v2322
    %2922 = vmatpush1.bf16.msra.mxu0 %v2321
    %2923 = vmatprep.subr.bf16.mxu0 %v2326
    %2924 = vmatpush1.bf16.msra.mxu0 %v2325
    %2925 = vmatprep.mubr.bf16.mxu0 %v1356
    %2926 = vmatmul.mubr.bf16.gmra.mrb[0].mxu0 %v1355
    %v2927 = vpop.f32.mrb[0].mxu0
    %v2928 = vadd.f32 %v2887, %v2927
    %v2929 = vpop.f32.mrb[0].mxu0
    %v2930 = vadd.f32 %v2889, %v2929
    %v2931 = vpop.f32.mrb[0].mxu0
    %v2932 = vpop.f32.mrb[0].mxu0
    %2933 = vdwg.mxu0
    %2934 = vmatprep.subr.bf16.mxu0 %v2330
    %2935 = vmatpush1.bf16.msra.mxu0 %v2329
    %2936 = vmatprep.subr.bf16.mxu0 %v2334
    %2937 = vmatpush1.bf16.msra.mxu0 %v2333
    %2938 = vmatprep.subr.bf16.mxu0 %v2338
    %2939 = vmatpush1.bf16.msra.mxu0 %v2337
    %2940 = vmatprep.subr.bf16.mxu0 %v2342
    %2941 = vmatpush1.bf16.msra.mxu0 %v2341
    %2942 = vmatprep.subr.bf16.mxu0 %v2346
    %2943 = vmatpush1.bf16.msra.mxu0 %v2345
    %2944 = vmatprep.subr.bf16.mxu0 %v2350
    %2945 = vmatpush1.bf16.msra.mxu0 %v2349
    %2946 = vmatprep.subr.bf16.mxu0 %v2354
    %2947 = vmatpush1.bf16.msra.mxu0 %v2353
    %2948 = vmatprep.subr.bf16.mxu0 %v2358
    %2949 = vmatpush1.bf16.msra.mxu0 %v2357
    %2950 = vmatprep.subr.bf16.mxu0 %v2362
    %2951 = vmatpush1.bf16.msra.mxu0 %v2361
    %2952 = vmatprep.subr.bf16.mxu0 %v2366
    %2953 = vmatpush1.bf16.msra.mxu0 %v2365
    %2954 = vmatprep.subr.bf16.mxu0 %v2370
    %2955 = vmatpush1.bf16.msra.mxu0 %v2369
    %2956 = vmatprep.subr.bf16.mxu0 %v2374
    %2957 = vmatpush1.bf16.msra.mxu0 %v2373
    %2958 = vmatprep.subr.bf16.mxu0 %v2378
    %2959 = vmatpush1.bf16.msra.mxu0 %v2377
    %2960 = vmatprep.subr.bf16.mxu0 %v2382
    %2961 = vmatpush1.bf16.msra.mxu0 %v2381
    %2962 = vmatprep.subr.bf16.mxu0 %v2386
    %2963 = vmatpush1.bf16.msra.mxu0 %v2385
    %2964 = vmatprep.subr.bf16.mxu0 %v2390
    %2965 = vmatpush1.bf16.msra.mxu0 %v2389
    %2966 = vmatprep.mubr.bf16.mxu0 %v1358
    %2967 = vmatmul.mubr.bf16.gmra.mrb[0].mxu0 %v1357
    %v2968 = vpop.f32.mrb[0].mxu0
    %v2969 = vadd.f32 %v2928, %v2968
    %v2970 = vpop.f32.mrb[0].mxu0
    %v2971 = vadd.f32 %v2930, %v2970
    %v2972 = vpop.f32.mrb[0].mxu0
    %v2973 = vpop.f32.mrb[0].mxu0
    %2974 = vdwg.mxu0
    %vm2975 = vcmp.gt.f32.partialorder %v2805, 0.0
    %vm2976 = vcmp.gt.f32.partialorder %v2807, 0.0
    %vm2977 = vcmp.gt.f32.partialorder %v2969, 0.0
    %vm2978 = vcmp.gt.f32.partialorder %v2971, 0.0
    %v2979 = vmul.f32 %v2805, 0.01
    %v2980 = vmul.f32 %v2807, 0.01
    %v2981 = vmul.f32 %v2969, 0.01
    %v2982 = vmul.f32 %v2971, 0.01
    %v2983 = vsel %vm2975, %v2805, %v2979
    %v2984 = vsel %vm2976, %v2807, %v2980
    %v2985 = vsel %vm2977, %v2969, %v2981
    %v2986 = vsel %vm2978, %v2971, %v2982
    %v2987 = vld [vmem:[%s3] sm:$0xf]
    %v2989 = vlaneseq
    %v2990 = vshrl.u32 %v2989, 7
    %v2991 = vsub.s32 0, %v2990
    %v2992 = vrot.slane %v2987, %v2991
    %v2993 = vlaneseq
    %v2994 = vshrl.u32 %v2993, 7
    %v2995 = vsub.s32 1, %v2994
    %v2996 = vrot.slane %v2987, %v2995
    %v2997 = vlaneseq
    %v2998 = vshrl.u32 %v2997, 7
    %v2999 = vsub.s32 2, %v2998
    %v3000 = vrot.slane %v2987, %v2999
    %v3001 = vlaneseq
    %v3002 = vshrl.u32 %v3001, 7
    %v3003 = vsub.s32 3, %v3002
    %v3004 = vrot.slane %v2987, %v3003
    %v3009 = vmul.f32 %v2983, %v2992
    %v3010 = vmul.f32 %v2984, %v2996
    %v3011 = vmul.f32 %v2985, %v3000
    %v3012 = vmul.f32 %v2986, %v3004
    %v3013 = vadd.f32 %v3009, %v3010
    %v3014 = vadd.f32 %v3013, %v3011
    %v3015 = vadd.f32 %v3014, %v3012
    %3016 = vadd.xlane.f32.xlu0 %v3015
    %v3017 = vpop.xlane.xlu0 %3016
    %s3018 = sld [smem:[#allocation2]]
    %v3019 = vstv %s3018
    %v3020 = vadd.f32 %v3017, %v3019
    %vm3021 = vcmask 7168
    %3022 = vst.msk [vmem:[#allocation7] sm:$0xff] %vm3021, %v3020
    // Predicated region
    $region30: #{tpu_custom_call.1} parent=1 // pred_check
      _
    $region31: #{tpu_custom_call.1} parent=1 // pred_check_branch
      %3024 = sbr.rel (0) target = $region33
    $region32: #{tpu_custom_call.1} parent=1 // pred_region
      // Predicated region
      $region34: #{tpu_custom_call.1} parent=32 // pred_check
        _
      $region35: #{tpu_custom_call.1} parent=32 // pred_check_branch
        %3026 = sbr.rel (0) target = $region37
      $region36: #{tpu_custom_call.1} parent=32 // pred_region
        // Predicated region
        $region38: #{tpu_custom_call.1} parent=36 // pred_check
          _
        $region39: #{tpu_custom_call.1} parent=36 // pred_check_branch
          %3028 = sbr.rel target = $region41
        $region40: #{tpu_custom_call.1} parent=36 // pred_region
          // Predicated region
          $region53: #{tpu_custom_call.1} parent=40 // pred_check
            _
          $region54: #{tpu_custom_call.1} parent=40 // pred_check_branch
            %3043 = sbr.rel (0) target = $region56
          $region55: #{tpu_custom_call.1} parent=40 // pred_region
            loop: start=0, step=1, limit=1
            $region57: #{tpu_custom_call.1} parent=55 // loop_pre_header
              _
            $region58: #{tpu_custom_call.1} parent=55 // loop_header
              %s3046 = sphi 0, %s3050
              %p3047 = scmp.ge.s32.totalorder %s3046, 1
              %s3051 = sphi [#allocation7], [#allocation7]
              %s3052 = sphi %s5, %s5
            $region59: #{tpu_custom_call.1} parent=55 // loop_header_branch
              %3049 = sbr.rel (%p3047) target = $region63
            $region60: #{tpu_custom_call.1} parent=55 // loop_body
              %v3053 = vld [vmem:[%s3051] sm:$0x3]
              %3054 = vst [vmem:[%s3052] sm:$0x3] %v3053
            $region61: #{tpu_custom_call.1} parent=55 // loop_footer
              %s3050 = sadd.s32 1, %s3046
            $region62: #{tpu_custom_call.1} parent=55 // loop_footer_branch
              %3045 = sbr.rel target = $region58
            $region63: #{tpu_custom_call.1} parent=55 // loop_exit
              _
          $region56: #{tpu_custom_call.1} parent=40 // pred_fallthru
            _
        $region41: #{tpu_custom_call.1} parent=36 // pred_fallthru
          _
        // Predicated region
        $region42: #{tpu_custom_call.1} parent=36 // pred_check
          _
        $region43: #{tpu_custom_call.1} parent=36 // pred_check_branch
          %3030 = sbr.rel (0) target = $region45
        $region44: #{tpu_custom_call.1} parent=36 // pred_region
          loop: start=0, step=1, limit=1
          $region46: #{tpu_custom_call.1} parent=44 // loop_pre_header
            _
          $region47: #{tpu_custom_call.1} parent=44 // loop_header
            %s3033 = sphi 0, %s3037
            %p3034 = scmp.ge.s32.totalorder %s3033, 1
            %s3038 = sphi [#allocation7], [#allocation7]
            %s3039 = sphi %s5, %s5
          $region48: #{tpu_custom_call.1} parent=44 // loop_header_branch
            %3036 = sbr.rel (%p3034) target = $region52
          $region49: #{tpu_custom_call.1} parent=44 // loop_body
            %v3040 = vld [vmem:[%s3038] sm:$0x3]
            %3041 = vst [vmem:[%s3039] sm:$0x3] %v3040
          $region50: #{tpu_custom_call.1} parent=44 // loop_footer
            %s3037 = sadd.s32 1, %s3033
          $region51: #{tpu_custom_call.1} parent=44 // loop_footer_branch
            %3032 = sbr.rel target = $region47
          $region52: #{tpu_custom_call.1} parent=44 // loop_exit
            _
        $region45: #{tpu_custom_call.1} parent=36 // pred_fallthru
          _
      $region37: #{tpu_custom_call.1} parent=32 // pred_fallthru
        _
      %3055 = vnop
    $region33: #{tpu_custom_call.1} parent=1 // pred_fallthru
      _
    // Predicated region
    $region64: #{tpu_custom_call.1} parent=1 // pred_check
      _
    $region65: #{tpu_custom_call.1} parent=1 // pred_check_branch
      %3057 = sbr.rel (0) target = $region67
    $region66: #{tpu_custom_call.1} parent=1 // pred_region
      _
    $region67: #{tpu_custom_call.1} parent=1 // pred_fallthru
      _
    %3058 = vsyncpa [#allocation4], 1
    %3059 = vsyncpa [#allocation6], 1

</llo_original>
